<compile_context>
chip_gen: v7x
topology: tpu7x:2x2x1
jax: 0.10.0
libtpu: 0.0.40
codegen_flags: <defaults>
</compile_context>

<pallas_src>
import functools

import jax
import jax.numpy as jnp
import numpy as np
from jax.experimental import pallas as pl
from jax.experimental.pallas import tpu as pltpu


# ----------------------------------------------------------------------------
# Static tap descriptors for a 3x3 / pad-1 depthwise conv on flattened planes.
# ----------------------------------------------------------------------------
def _make_taps(H, W, stride):
    """Returns (taps, (Hout, Wout)).

    taps: 9 static tuples (plane_index, roll_shift, sr, sc, needs_mask)
    describing how to gather each kernel tap from the flattened
    (spatial-parity) plane(s) at output resolution.
    """
    assert stride in (1, 2)
    if stride == 1:
        Hp, Wp = H, W
    else:
        # TODO(synk): odd spatial dims with stride=2 (ragged parity planes).
        assert H % 2 == 0 and W % 2 == 0, "stride-2 path assumes even H, W"
        Hp, Wp = H // 2, W // 2
    L = Hp * Wp
    taps = []
    for dh in range(3):
        for dw in range(3):
            dr, dc = dh - 1, dw - 1
            if stride == 1:
                plane, sr, sc = 0, dr, dc
            else:
                # parity plane (ee, eo, oe, oo) + shift within the plane
                plane = (0 if dr == 0 else 2) + (0 if dc == 0 else 1)
                sr = -1 if dr == -1 else 0
                sc = -1 if dc == -1 else 0
            shift = int((-(sr * Wp + sc)) % L)       # non-negative roll amount
            needs_mask = not (sr == 0 and sc == 0)
            taps.append((plane, shift, sr, sc, needs_mask))
    return taps, (Hp, Wp)


# ----------------------------------------------------------------------------
# Fused whole-block kernel (one image per grid step)
# ----------------------------------------------------------------------------
def _block_kernel(*refs, taps_first, taps_rest, hw, activation, use_branch, bo):
    """refs = (planes_ref, rowcol_ref, [wcomb,bias,alpha]*n_layers, o_ref, t_ref)

    planes_ref : (P, 1, Cin, L)  spatial(-parity) planes, H*W on lanes
    rowcol_ref : (2, L) int32    row / col index of each flattened position
    wcomb      : (Cout, 9*Cin)   dw taps folded through the 1x1 (BN folded)
    bias       : (Cout, 1)       pw_bias + wpw @ dw_bias (BN folded)
    alpha      : (Cout, 1)       PReLU slope
    o_ref      : (1, bo, 2, L)   interleaved (shuffled) output block
    t_ref      : (9*Cin_max, L)  VMEM scratch holding the stacked taps
    """
    planes_ref, rowcol_ref = refs[0], refs[1]
    o_ref, t_ref = refs[-2], refs[-1]
    wrefs = refs[2:-2]
    Hout, Wout = hw

    row = rowcol_ref[0:1, :]                              # (1, L) int32
    col = rowcol_ref[1:2, :]
    mask_cache = {}

    def border_mask(sr, sc):
        key = (sr, sc)
        if key not in mask_cache:
            conds = []
            if sr < 0:
                conds.append(row >= -sr)
            if sr > 0:
                conds.append(row < Hout - sr)
            if sc < 0:
                conds.append(col >= -sc)
            if sc > 0:
                conds.append(col < Wout - sc)
            m = conds[0]
            for c in conds[1:]:
                m = jnp.logical_and(m, c)
            mask_cache[key] = m
        return mask_cache[key]

    def act(y, alpha):
        if activation == "relu":            # ConvBNAct uses nn.ReLU6
            return jnp.minimum(jnp.maximum(y, 0.0), 6.0)
        if activation == "hswish":          # x * relu6(x + 3) / 6
            return y * jnp.minimum(jnp.maximum(y + 3.0, 0.0), 6.0) * (1.0 / 6.0)
        if activation == "prelu":           # per-output-channel slope
            return jnp.where(y >= 0.0, y, alpha * y)
        return y

    def dw_pw(planes, taps, li):
        """One fused ConvBNAct(dw3x3) + ConvBNAct(1x1, act) pair, all in VMEM."""
        wcomb = wrefs[3 * li][...]          # (Cout, 9*Cin), resident
        bias = wrefs[3 * li + 1][...]       # (Cout, 1)
        alpha = wrefs[3 * li + 2][...]      # (Cout, 1)
        cin = planes[0].shape[0]
        for k, (p, shift, sr, sc, needs_mask) in enumerate(taps):
            v = planes[p]
            if shift:
                v = pltpu.roll(v, shift, axis=1)          # XLU lane rotate
            if needs_mask:                                # zero-pad halo
                v = jnp.where(border_mask(sr, sc), v, 0.0)
            t_ref[k * cin:(k + 1) * cin, :] = v           # stack tap rows
        t = t_ref[0:9 * cin, :]                           # (9*Cin, L)
        y = jnp.dot(wcomb, t, preferred_element_type=jnp.float32) + bias
        return act(y, alpha)

    P = planes_ref.shape[0]
    in_planes = [planes_ref[p, 0] for p in range(P)]      # each (Cin, L)

    if use_branch:
        x1 = dw_pw(in_planes, taps_first, 0)              # branch_1
        y = dw_pw(in_planes, taps_first, 1)               # branch_2[0]
        nxt = 2
    else:
        x0 = in_planes[0]
        x1 = x0[:bo]                                      # identity half
        y = dw_pw([x0[bo:]], taps_first, 0)               # branch_2[0]
        nxt = 1
    y = dw_pw([y], taps_rest, nxt)                        # branch_2[1]
    y = dw_pw([y], taps_rest, nxt + 1)                    # branch_2[2]

    # Fused channel shuffle: even output channels <- branch 1, odd <- branch 2.
    o_ref[0, :, 0, :] = x1
    o_ref[0, :, 1, :] = y


# ----------------------------------------------------------------------------
# Block forward (single pallas_call), parameter init / prep, pure-JAX reference
# ----------------------------------------------------------------------------
@functools.partial(jax.jit, static_argnames=("stride", "activation", "use_branch"))
def shuffle_block_x_forward(x, prepared, stride, activation, use_branch):
    """x: (N, C, H, W) NCHW -> (N, out_channels, Hout, Wout) NCHW."""
    N, Cin, H, W = x.shape
    taps_first, (Hout, Wout) = _make_taps(H, W, stride)
    taps_rest, _ = _make_taps(Hout, Wout, 1)
    L = Hout * Wout

    if stride == 1:
        planes = x.reshape(1, N, Cin, L)                   # free reshape
    else:
        # Space-to-depth parity planes; all further work at output resolution.
        # TODO(synk): fold this split into BlockSpecs over an
        # (N, Cin, H/2, 2, W/2, 2) view to avoid the extra XLA pass at scale.
        planes = jnp.stack(
            [x[:, :, rp::2, cp::2].reshape(N, Cin, L)
             for rp in (0, 1) for cp in (0, 1)], axis=0)
    P = planes.shape[0]

    # Tiny (2, L) int32 row/col table -> in-kernel border masks (replaces the
    # old (9, L) f32 mask input).
    rr, cc = np.meshgrid(np.arange(Hout), np.arange(Wout), indexing="ij")
    rowcol = jnp.asarray(
        np.stack([rr.reshape(-1), cc.reshape(-1)]).astype(np.int32))

    layer_keys = (["b1", "b2_0", "b2_1", "b2_2"] if use_branch
                  else ["b2_0", "b2_1", "b2_2"])
    weight_args, weight_specs = [], []
    for k in layer_keys:
        for arr in prepared[k]:                            # wcomb, bias, alpha
            weight_args.append(arr)
            weight_specs.append(pl.BlockSpec(arr.shape, lambda n: (0, 0)))
    bo = prepared[layer_keys[-1]][0].shape[0]              # branch out channels
    cin_max = max(prepared[k][0].shape[1] // 9 for k in layer_keys)

    kernel = functools.partial(
        _block_kernel, taps_first=taps_first, taps_rest=taps_rest,
        hw=(Hout, Wout), activation=activation, use_branch=use_branch, bo=bo)

    out = pl.pallas_call(
        kernel,
        out_shape=jax.ShapeDtypeStruct((N, bo, 2, L), jnp.float32),
        grid=(N,),
        in_specs=[
            pl.BlockSpec((P, 1, Cin, L), lambda n: (0, n, 0, 0)),
            pl.BlockSpec(rowcol.shape, lambda n: (0, 0)),
        ] + weight_specs,
        out_specs=pl.BlockSpec((1, bo, 2, L), lambda n: (n, 0, 0, 0)),
        scratch_shapes=[pltpu.VMEM((9 * cin_max, L), jnp.float32)],
        compiler_params=pltpu.CompilerParams(
            dimension_semantics=("parallel",)),
    )(planes, rowcol, *weight_args)

    # (N, bo, 2, L) -> (N, 2*bo, Hout, Wout): adjacent-dim merge (free). This
    # IS channel_shuffle(concat(x1, y), groups=2): even ch = x1, odd ch = y.
    return out.reshape(N, 2 * bo, Hout, Wout)


def _bn_fold(key, c, eps=1e-5):
    k1, k2, k3, k4 = jax.random.split(key, 4)
    gamma = 1.0 + 0.1 * jax.random.normal(k1, (c,), jnp.float32)
    beta = 0.1 * jax.random.normal(k2, (c,), jnp.float32)
    mean = 0.1 * jax.random.normal(k3, (c,), jnp.float32)
    var = 0.5 + jax.random.uniform(k4, (c,), jnp.float32)
    scale = gamma * jax.lax.rsqrt(var + eps)
    bias = beta - mean * scale
    return scale, bias


def init_params(key, in_channels, out_channels, stride):
    bo = out_channels // 2
    use_branch = (stride == 2) or (in_channels != out_channels)
    keys = iter(jax.random.split(key, 64))

    def conv_bn(cin, cout, depthwise):
        if depthwise:                                # (O, I/groups=1, 3, 3)
            w = 0.2 * jax.random.normal(next(keys), (cout, 1, 3, 3), jnp.float32)
        else:                                        # (Cout, Cin) 1x1
            w = 0.2 * jax.random.normal(next(keys), (cout, cin), jnp.float32)
        scale, bias = _bn_fold(next(keys), cout)
        return {"w": w, "scale": scale, "bias": bias}

    def pair(cin, cout):
        return {"dw": conv_bn(cin, cin, True),
                "pw": conv_bn(cin, cout, False),
                "alpha": jnp.full((cout,), 0.25, jnp.float32)}   # PReLU slope

    params = {}
    if use_branch:
        params["b1"] = pair(in_channels, bo)
        b2_in = in_channels
    else:
        b2_in = bo
    params["b2_0"] = pair(b2_in, bo)
    params["b2_1"] = pair(bo, bo)
    params["b2_2"] = pair(bo, bo)
    return params, use_branch


def _prepare_pair(p):
    """Fold BN into the conv weights and the dw taps through the 1x1 conv."""
    dw, pw = p["dw"], p["pw"]
    cin = dw["w"].shape[0]
    cout = pw["w"].shape[0]
    wdw_t = dw["w"].reshape(cin, 9) * dw["scale"][:, None]      # (Cin, 9)
    wpw = pw["w"] * pw["scale"][:, None]                        # (Cout, Cin)
    # Combined weight: column index = tap_k * Cin + channel_c.
    wcomb = jnp.einsum("oc,ck->okc", wpw, wdw_t).reshape(cout, 9 * cin)
    bias = pw["bias"] + wpw @ dw["bias"]                        # (Cout,)
    return (wcomb, bias.reshape(cout, 1), p["alpha"].reshape(cout, 1))


def prepare_params(params):
    return {k: _prepare_pair(v) for k, v in params.items()}


# -------- pure-JAX reference (no Pallas) for self-check --------
def _ref_act(y, activation, alpha):
    if activation == "relu":
        return jnp.clip(y, 0.0, 6.0)
    if activation == "hswish":
        return y * jnp.clip(y + 3.0, 0.0, 6.0) / 6.0
    if activation == "prelu":
        return jnp.where(y >= 0, y, alpha[None, :, None, None] * y)
    return y


def _ref_pair(x, p, stride, activation):
    dw, pw = p["dw"], p["pw"]
    cin = x.shape[1]
    y = jax.lax.conv_general_dilated(
        x, dw["w"], window_strides=(stride, stride), padding=((1, 1), (1, 1)),
        dimension_numbers=("NCHW", "OIHW", "NCHW"), feature_group_count=cin,
        precision=jax.lax.Precision.HIGHEST)
    y = y * dw["scale"][None, :, None, None] + dw["bias"][None, :, None, None]
    y = jnp.einsum("nchw,oc->nohw", y, pw["w"],
                   precision=jax.lax.Precision.HIGHEST)
    y = y * pw["scale"][None, :, None, None] + pw["bias"][None, :, None, None]
    return _ref_act(y, activation, p["alpha"])


def _ref_channel_shuffle(x, groups=2):
    n, c, h, w = x.shape
    x = x.reshape(n, groups, c // groups, h, w)
    x = jnp.swapaxes(x, 1, 2)
    return x.reshape(n, c, h, w)


def shuffle_block_x_ref(x, params, stride, activation, use_branch):
    if use_branch:
        x1 = _ref_pair(x, params["b1"], stride, activation)
        x2 = x
    else:
        c = x.shape[1] // 2
        x1, x2 = x[:, :c], x[:, c:]
    y = x2
    for i in range(3):
        y = _ref_pair(y, params[f"b2_{i}"], stride if i == 0 else 1, activation)
    return _ref_channel_shuffle(jnp.concatenate([x1, y], axis=1), 2)


# ----------------------------------------------------------------------------
if __name__ == "__main__":
    key = jax.random.PRNGKey(0)
    N, H, W = 2, 16, 16
    configs = [
        # (Cin, Cout, stride, activation)
        (4, 8, 1, "relu"),      # use_branch (in != out), the nominal shape
        (8, 8, 1, "hswish"),    # identity channel-split path
        (4, 8, 2, "prelu"),     # stride-2 parity-plane path
        (8, 8, 2, "relu"),      # stride-2 with in == out
    ]
    for i, (cin, cout, stride, activation) in enumerate(configs):
        kx, kp = jax.random.split(jax.random.fold_in(key, i))
        x = jax.random.normal(kx, (N, cin, H, W), jnp.float32)     # NCHW input
        params, use_branch = init_params(kp, cin, cout, stride)
        prepared = prepare_params(params)                          # BN folded once

        out = shuffle_block_x_forward(x, prepared, stride=stride,
                                      activation=activation,
                                      use_branch=use_branch)
        out = jax.block_until_ready(out)

        ref = shuffle_block_x_ref(x, params, stride, activation, use_branch)
        assert out.shape == (N, cout, H // stride, W // stride), out.shape
        np.testing.assert_allclose(np.asarray(out), np.asarray(ref),
                                   atol=2e-4, rtol=2e-4)
    print("KERNEL_OK")
</pallas_src>

<mosaic_0001>
module attributes {stable_mosaic.version = 11 : i64} {
  func.func @_block_kernel(%arg0: i32, %arg1: memref<1x1x4x256xf32, #tpu.memory_space<vmem>>, %arg2: memref<2x256xi32, #tpu.memory_space<vmem>>, %arg3: memref<4x36xf32, #tpu.memory_space<vmem>>, %arg4: memref<4x1xf32, #tpu.memory_space<vmem>>, %arg5: memref<4x1xf32, #tpu.memory_space<vmem>>, %arg6: memref<4x36xf32, #tpu.memory_space<vmem>>, %arg7: memref<4x1xf32, #tpu.memory_space<vmem>>, %arg8: memref<4x1xf32, #tpu.memory_space<vmem>>, %arg9: memref<4x36xf32, #tpu.memory_space<vmem>>, %arg10: memref<4x1xf32, #tpu.memory_space<vmem>>, %arg11: memref<4x1xf32, #tpu.memory_space<vmem>>, %arg12: memref<4x36xf32, #tpu.memory_space<vmem>>, %arg13: memref<4x1xf32, #tpu.memory_space<vmem>>, %arg14: memref<4x1xf32, #tpu.memory_space<vmem>>, %arg15: memref<1x4x2x256xf32, #tpu.memory_space<vmem>>, %arg16: memref<36x256xf32, #tpu.memory_space<vmem>>) attributes {dimension_semantics = [#tpu.dimension_semantics<parallel>], iteration_bounds = array<i64: 2>, scalar_prefetch = 0 : i64, scratch_operands = 1 : i64, tpu.core_type = #tpu.core_type<tc>, window_params = [{transform_indices = @transform_0, window_bounds = array<i64: 1, 1, 4, 256>}, {pipeline_mode = #tpu.pipeline_mode<synchronous>, transform_indices = @transform_1, window_bounds = array<i64: 2, 256>}, {pipeline_mode = #tpu.pipeline_mode<synchronous>, transform_indices = @transform_2, window_bounds = array<i64: 4, 36>}, {pipeline_mode = #tpu.pipeline_mode<synchronous>, transform_indices = @transform_3, window_bounds = array<i64: 4, 1>}, {pipeline_mode = #tpu.pipeline_mode<synchronous>, transform_indices = @transform_4, window_bounds = array<i64: 4, 1>}, {pipeline_mode = #tpu.pipeline_mode<synchronous>, transform_indices = @transform_5, window_bounds = array<i64: 4, 36>}, {pipeline_mode = #tpu.pipeline_mode<synchronous>, transform_indices = @transform_6, window_bounds = array<i64: 4, 1>}, {pipeline_mode = #tpu.pipeline_mode<synchronous>, transform_indices = @transform_7, window_bounds = array<i64: 4, 1>}, {pipeline_mode = #tpu.pipeline_mode<synchronous>, transform_indices = @transform_8, window_bounds = array<i64: 4, 36>}, {pipeline_mode = #tpu.pipeline_mode<synchronous>, transform_indices = @transform_9, window_bounds = array<i64: 4, 1>}, {pipeline_mode = #tpu.pipeline_mode<synchronous>, transform_indices = @transform_10, window_bounds = array<i64: 4, 1>}, {pipeline_mode = #tpu.pipeline_mode<synchronous>, transform_indices = @transform_11, window_bounds = array<i64: 4, 36>}, {pipeline_mode = #tpu.pipeline_mode<synchronous>, transform_indices = @transform_12, window_bounds = array<i64: 4, 1>}, {pipeline_mode = #tpu.pipeline_mode<synchronous>, transform_indices = @transform_13, window_bounds = array<i64: 4, 1>}, {transform_indices = @transform_14, window_bounds = array<i64: 1, 4, 2, 256>}]} {
    %c0 = arith.constant 0 : index
    %c0_0 = arith.constant 0 : index
    %0 = vector.load %arg2[%c0, %c0_0] : memref<2x256xi32, #tpu.memory_space<vmem>>, vector<1x256xi32>
    %c1 = arith.constant 1 : index
    %c0_1 = arith.constant 0 : index
    %1 = vector.load %arg2[%c1, %c0_1] : memref<2x256xi32, #tpu.memory_space<vmem>>, vector<1x256xi32>
    %c0_2 = arith.constant 0 : index
    %c0_3 = arith.constant 0 : index
    %c0_4 = arith.constant 0 : index
    %c0_5 = arith.constant 0 : index
    %2 = vector.load %arg1[%c0_2, %c0_3, %c0_4, %c0_5] : memref<1x1x4x256xf32, #tpu.memory_space<vmem>>, vector<1x1x4x256xf32>
    %3 = vector.shape_cast %2 : vector<1x1x4x256xf32> to vector<4x256xf32>
    %c0_6 = arith.constant 0 : index
    %c0_7 = arith.constant 0 : index
    %4 = vector.load %arg3[%c0_6, %c0_7] : memref<4x36xf32, #tpu.memory_space<vmem>>, vector<4x36xf32>
    %c0_8 = arith.constant 0 : index
    %c0_9 = arith.constant 0 : index
    %5 = vector.load %arg4[%c0_8, %c0_9] : memref<4x1xf32, #tpu.memory_space<vmem>>, vector<4x1xf32>
    %c17_i32 = arith.constant 17 : i32
    %6 = tpu.dynamic_rotate %3 by %c17_i32 dim 1 : vector<4x256xf32>, i32 -> vector<4x256xf32>
    %c1_i32 = arith.constant 1 : i32
    %7 = vector.broadcast %c1_i32 : i32 to vector<1x256xi32>
    %8 = arith.cmpi sge, %0, %7 : vector<1x256xi32>
    %c1_i32_10 = arith.constant 1 : i32
    %9 = vector.broadcast %c1_i32_10 : i32 to vector<1x256xi32>
    %10 = arith.cmpi sge, %1, %9 : vector<1x256xi32>
    %11 = arith.andi %8, %10 : vector<1x256xi1>
    %cst = arith.constant 0.000000e+00 : f32
    %12 = vector.shape_cast %11 : vector<1x256xi1> to vector<1x256xi1>
    %13 = vector.broadcast %12 : vector<1x256xi1> to vector<4x256xi1>
    %14 = vector.broadcast %cst : f32 to vector<4x256xf32>
    %15 = arith.select %13, %6, %14 : vector<4x256xi1>, vector<4x256xf32>
    %c0_11 = arith.constant 0 : index
    %c0_12 = arith.constant 0 : index
    %16 = vector.load %arg16[%c0_11, %c0_12] : memref<36x256xf32, #tpu.memory_space<vmem>>, vector<4x256xf32>
    tpu.vector_store %arg16[%c0_11, %c0_12], %15 {strides = array<i32>} : memref<36x256xf32, #tpu.memory_space<vmem>>, vector<4x256xf32>,
    %c16_i32 = arith.constant 16 : i32
    %17 = tpu.dynamic_rotate %3 by %c16_i32 dim 1 : vector<4x256xf32>, i32 -> vector<4x256xf32>
    %c1_i32_13 = arith.constant 1 : i32
    %18 = vector.broadcast %c1_i32_13 : i32 to vector<1x256xi32>
    %19 = arith.cmpi sge, %0, %18 : vector<1x256xi32>
    %cst_14 = arith.constant 0.000000e+00 : f32
    %20 = vector.shape_cast %19 : vector<1x256xi1> to vector<1x256xi1>
    %21 = vector.broadcast %20 : vector<1x256xi1> to vector<4x256xi1>
    %22 = vector.broadcast %cst_14 : f32 to vector<4x256xf32>
    %23 = arith.select %21, %17, %22 : vector<4x256xi1>, vector<4x256xf32>
    %c4 = arith.constant 4 : index
    %c0_15 = arith.constant 0 : index
    %24 = vector.load %arg16[%c4, %c0_15] : memref<36x256xf32, #tpu.memory_space<vmem>>, vector<4x256xf32>
    tpu.vector_store %arg16[%c4, %c0_15], %23 {strides = array<i32>} : memref<36x256xf32, #tpu.memory_space<vmem>>, vector<4x256xf32>,
    %c15_i32 = arith.constant 15 : i32
    %25 = tpu.dynamic_rotate %3 by %c15_i32 dim 1 : vector<4x256xf32>, i32 -> vector<4x256xf32>
    %c1_i32_16 = arith.constant 1 : i32
    %26 = vector.broadcast %c1_i32_16 : i32 to vector<1x256xi32>
    %27 = arith.cmpi sge, %0, %26 : vector<1x256xi32>
    %c15_i32_17 = arith.constant 15 : i32
    %28 = vector.broadcast %c15_i32_17 : i32 to vector<1x256xi32>
    %29 = arith.cmpi slt, %1, %28 : vector<1x256xi32>
    %30 = arith.andi %27, %29 : vector<1x256xi1>
    %cst_18 = arith.constant 0.000000e+00 : f32
    %31 = vector.shape_cast %30 : vector<1x256xi1> to vector<1x256xi1>
    %32 = vector.broadcast %31 : vector<1x256xi1> to vector<4x256xi1>
    %33 = vector.broadcast %cst_18 : f32 to vector<4x256xf32>
    %34 = arith.select %32, %25, %33 : vector<4x256xi1>, vector<4x256xf32>
    %c8 = arith.constant 8 : index
    %c0_19 = arith.constant 0 : index
    %35 = vector.load %arg16[%c8, %c0_19] : memref<36x256xf32, #tpu.memory_space<vmem>>, vector<4x256xf32>
    tpu.vector_store %arg16[%c8, %c0_19], %34 {strides = array<i32>} : memref<36x256xf32, #tpu.memory_space<vmem>>, vector<4x256xf32>,
    %c1_i32_20 = arith.constant 1 : i32
    %36 = tpu.dynamic_rotate %3 by %c1_i32_20 dim 1 : vector<4x256xf32>, i32 -> vector<4x256xf32>
    %c1_i32_21 = arith.constant 1 : i32
    %37 = vector.broadcast %c1_i32_21 : i32 to vector<1x256xi32>
    %38 = arith.cmpi sge, %1, %37 : vector<1x256xi32>
    %cst_22 = arith.constant 0.000000e+00 : f32
    %39 = vector.shape_cast %38 : vector<1x256xi1> to vector<1x256xi1>
    %40 = vector.broadcast %39 : vector<1x256xi1> to vector<4x256xi1>
    %41 = vector.broadcast %cst_22 : f32 to vector<4x256xf32>
    %42 = arith.select %40, %36, %41 : vector<4x256xi1>, vector<4x256xf32>
    %c12 = arith.constant 12 : index
    %c0_23 = arith.constant 0 : index
    %43 = vector.load %arg16[%c12, %c0_23] : memref<36x256xf32, #tpu.memory_space<vmem>>, vector<4x256xf32>
    tpu.vector_store %arg16[%c12, %c0_23], %42 {strides = array<i32>} : memref<36x256xf32, #tpu.memory_space<vmem>>, vector<4x256xf32>,
    %c16 = arith.constant 16 : index
    %c0_24 = arith.constant 0 : index
    %44 = vector.load %arg16[%c16, %c0_24] : memref<36x256xf32, #tpu.memory_space<vmem>>, vector<4x256xf32>
    tpu.vector_store %arg16[%c16, %c0_24], %3 {strides = array<i32>} : memref<36x256xf32, #tpu.memory_space<vmem>>, vector<4x256xf32>,
    %c255_i32 = arith.constant 255 : i32
    %45 = tpu.dynamic_rotate %3 by %c255_i32 dim 1 : vector<4x256xf32>, i32 -> vector<4x256xf32>
    %c15_i32_25 = arith.constant 15 : i32
    %46 = vector.broadcast %c15_i32_25 : i32 to vector<1x256xi32>
    %47 = arith.cmpi slt, %1, %46 : vector<1x256xi32>
    %cst_26 = arith.constant 0.000000e+00 : f32
    %48 = vector.shape_cast %47 : vector<1x256xi1> to vector<1x256xi1>
    %49 = vector.broadcast %48 : vector<1x256xi1> to vector<4x256xi1>
    %50 = vector.broadcast %cst_26 : f32 to vector<4x256xf32>
    %51 = arith.select %49, %45, %50 : vector<4x256xi1>, vector<4x256xf32>
    %c20 = arith.constant 20 : index
    %c0_27 = arith.constant 0 : index
    %52 = vector.load %arg16[%c20, %c0_27] : memref<36x256xf32, #tpu.memory_space<vmem>>, vector<4x256xf32>
    tpu.vector_store %arg16[%c20, %c0_27], %51 {strides = array<i32>} : memref<36x256xf32, #tpu.memory_space<vmem>>, vector<4x256xf32>,
    %c241_i32 = arith.constant 241 : i32
    %53 = tpu.dynamic_rotate %3 by %c241_i32 dim 1 : vector<4x256xf32>, i32 -> vector<4x256xf32>
    %c15_i32_28 = arith.constant 15 : i32
    %54 = vector.broadcast %c15_i32_28 : i32 to vector<1x256xi32>
    %55 = arith.cmpi slt, %0, %54 : vector<1x256xi32>
    %c1_i32_29 = arith.constant 1 : i32
    %56 = vector.broadcast %c1_i32_29 : i32 to vector<1x256xi32>
    %57 = arith.cmpi sge, %1, %56 : vector<1x256xi32>
    %58 = arith.andi %55, %57 : vector<1x256xi1>
    %cst_30 = arith.constant 0.000000e+00 : f32
    %59 = vector.shape_cast %58 : vector<1x256xi1> to vector<1x256xi1>
    %60 = vector.broadcast %59 : vector<1x256xi1> to vector<4x256xi1>
    %61 = vector.broadcast %cst_30 : f32 to vector<4x256xf32>
    %62 = arith.select %60, %53, %61 : vector<4x256xi1>, vector<4x256xf32>
    %c24 = arith.constant 24 : index
    %c0_31 = arith.constant 0 : index
    %63 = vector.load %arg16[%c24, %c0_31] : memref<36x256xf32, #tpu.memory_space<vmem>>, vector<4x256xf32>
    tpu.vector_store %arg16[%c24, %c0_31], %62 {strides = array<i32>} : memref<36x256xf32, #tpu.memory_space<vmem>>, vector<4x256xf32>,
    %c240_i32 = arith.constant 240 : i32
    %64 = tpu.dynamic_rotate %3 by %c240_i32 dim 1 : vector<4x256xf32>, i32 -> vector<4x256xf32>
    %c15_i32_32 = arith.constant 15 : i32
    %65 = vector.broadcast %c15_i32_32 : i32 to vector<1x256xi32>
    %66 = arith.cmpi slt, %0, %65 : vector<1x256xi32>
    %cst_33 = arith.constant 0.000000e+00 : f32
    %67 = vector.shape_cast %66 : vector<1x256xi1> to vector<1x256xi1>
    %68 = vector.broadcast %67 : vector<1x256xi1> to vector<4x256xi1>
    %69 = vector.broadcast %cst_33 : f32 to vector<4x256xf32>
    %70 = arith.select %68, %64, %69 : vector<4x256xi1>, vector<4x256xf32>
    %c28 = arith.constant 28 : index
    %c0_34 = arith.constant 0 : index
    %71 = vector.load %arg16[%c28, %c0_34] : memref<36x256xf32, #tpu.memory_space<vmem>>, vector<4x256xf32>
    tpu.vector_store %arg16[%c28, %c0_34], %70 {strides = array<i32>} : memref<36x256xf32, #tpu.memory_space<vmem>>, vector<4x256xf32>,
    %c239_i32 = arith.constant 239 : i32
    %72 = tpu.dynamic_rotate %3 by %c239_i32 dim 1 : vector<4x256xf32>, i32 -> vector<4x256xf32>
    %c15_i32_35 = arith.constant 15 : i32
    %73 = vector.broadcast %c15_i32_35 : i32 to vector<1x256xi32>
    %74 = arith.cmpi slt, %0, %73 : vector<1x256xi32>
    %c15_i32_36 = arith.constant 15 : i32
    %75 = vector.broadcast %c15_i32_36 : i32 to vector<1x256xi32>
    %76 = arith.cmpi slt, %1, %75 : vector<1x256xi32>
    %77 = arith.andi %74, %76 : vector<1x256xi1>
    %cst_37 = arith.constant 0.000000e+00 : f32
    %78 = vector.shape_cast %77 : vector<1x256xi1> to vector<1x256xi1>
    %79 = vector.broadcast %78 : vector<1x256xi1> to vector<4x256xi1>
    %80 = vector.broadcast %cst_37 : f32 to vector<4x256xf32>
    %81 = arith.select %79, %72, %80 : vector<4x256xi1>, vector<4x256xf32>
    %c32 = arith.constant 32 : index
    %c0_38 = arith.constant 0 : index
    %82 = vector.load %arg16[%c32, %c0_38] : memref<36x256xf32, #tpu.memory_space<vmem>>, vector<4x256xf32>
    tpu.vector_store %arg16[%c32, %c0_38], %81 {strides = array<i32>} : memref<36x256xf32, #tpu.memory_space<vmem>>, vector<4x256xf32>,
    %c0_39 = arith.constant 0 : index
    %c0_40 = arith.constant 0 : index
    %83 = vector.load %arg16[%c0_39, %c0_40] : memref<36x256xf32, #tpu.memory_space<vmem>>, vector<36x256xf32>
    %cst_41 = arith.constant dense<0.000000e+00> : vector<4x256xf32>
    %84 = tpu.matmul %4, %83, %cst_41 {dimension_numbers = #tpu.dot_dimension_numbers<[1], [0], [0], [1], [0, 0, 1, 1], [], []>} : vector<4x36xf32>, vector<36x256xf32>, vector<4x256xf32> -> vector<4x256xf32>
    %85 = vector.broadcast %5 : vector<4x1xf32> to vector<4x256xf32>
    %86 = arith.addf %84, %85 : vector<4x256xf32>
    %cst_42 = arith.constant 0.000000e+00 : f32
    %87 = vector.broadcast %cst_42 : f32 to vector<4x256xf32>
    %88 = arith.maximumf %86, %87 : vector<4x256xf32>
    %cst_43 = arith.constant 6.000000e+00 : f32
    %89 = vector.broadcast %cst_43 : f32 to vector<4x256xf32>
    %90 = arith.minimumf %88, %89 : vector<4x256xf32>
    %c0_44 = arith.constant 0 : index
    %c0_45 = arith.constant 0 : index
    %91 = vector.load %arg6[%c0_44, %c0_45] : memref<4x36xf32, #tpu.memory_space<vmem>>, vector<4x36xf32>
    %c0_46 = arith.constant 0 : index
    %c0_47 = arith.constant 0 : index
    %92 = vector.load %arg7[%c0_46, %c0_47] : memref<4x1xf32, #tpu.memory_space<vmem>>, vector<4x1xf32>
    %c17_i32_48 = arith.constant 17 : i32
    %93 = tpu.dynamic_rotate %3 by %c17_i32_48 dim 1 : vector<4x256xf32>, i32 -> vector<4x256xf32>
    %cst_49 = arith.constant 0.000000e+00 : f32
    %94 = vector.shape_cast %11 : vector<1x256xi1> to vector<1x256xi1>
    %95 = vector.broadcast %94 : vector<1x256xi1> to vector<4x256xi1>
    %96 = vector.broadcast %cst_49 : f32 to vector<4x256xf32>
    %97 = arith.select %95, %93, %96 : vector<4x256xi1>, vector<4x256xf32>
    %c0_50 = arith.constant 0 : index
    %c0_51 = arith.constant 0 : index
    %98 = vector.load %arg16[%c0_50, %c0_51] : memref<36x256xf32, #tpu.memory_space<vmem>>, vector<4x256xf32>
    tpu.vector_store %arg16[%c0_50, %c0_51], %97 {strides = array<i32>} : memref<36x256xf32, #tpu.memory_space<vmem>>, vector<4x256xf32>,
    %c16_i32_52 = arith.constant 16 : i32
    %99 = tpu.dynamic_rotate %3 by %c16_i32_52 dim 1 : vector<4x256xf32>, i32 -> vector<4x256xf32>
    %cst_53 = arith.constant 0.000000e+00 : f32
    %100 = vector.shape_cast %19 : vector<1x256xi1> to vector<1x256xi1>
    %101 = vector.broadcast %100 : vector<1x256xi1> to vector<4x256xi1>
    %102 = vector.broadcast %cst_53 : f32 to vector<4x256xf32>
    %103 = arith.select %101, %99, %102 : vector<4x256xi1>, vector<4x256xf32>
    %c4_54 = arith.constant 4 : index
    %c0_55 = arith.constant 0 : index
    %104 = vector.load %arg16[%c4_54, %c0_55] : memref<36x256xf32, #tpu.memory_space<vmem>>, vector<4x256xf32>
    tpu.vector_store %arg16[%c4_54, %c0_55], %103 {strides = array<i32>} : memref<36x256xf32, #tpu.memory_space<vmem>>, vector<4x256xf32>,
    %c15_i32_56 = arith.constant 15 : i32
    %105 = tpu.dynamic_rotate %3 by %c15_i32_56 dim 1 : vector<4x256xf32>, i32 -> vector<4x256xf32>
    %cst_57 = arith.constant 0.000000e+00 : f32
    %106 = vector.shape_cast %30 : vector<1x256xi1> to vector<1x256xi1>
    %107 = vector.broadcast %106 : vector<1x256xi1> to vector<4x256xi1>
    %108 = vector.broadcast %cst_57 : f32 to vector<4x256xf32>
    %109 = arith.select %107, %105, %108 : vector<4x256xi1>, vector<4x256xf32>
    %c8_58 = arith.constant 8 : index
    %c0_59 = arith.constant 0 : index
    %110 = vector.load %arg16[%c8_58, %c0_59] : memref<36x256xf32, #tpu.memory_space<vmem>>, vector<4x256xf32>
    tpu.vector_store %arg16[%c8_58, %c0_59], %109 {strides = array<i32>} : memref<36x256xf32, #tpu.memory_space<vmem>>, vector<4x256xf32>,
    %c1_i32_60 = arith.constant 1 : i32
    %111 = tpu.dynamic_rotate %3 by %c1_i32_60 dim 1 : vector<4x256xf32>, i32 -> vector<4x256xf32>
    %cst_61 = arith.constant 0.000000e+00 : f32
    %112 = vector.shape_cast %38 : vector<1x256xi1> to vector<1x256xi1>
    %113 = vector.broadcast %112 : vector<1x256xi1> to vector<4x256xi1>
    %114 = vector.broadcast %cst_61 : f32 to vector<4x256xf32>
    %115 = arith.select %113, %111, %114 : vector<4x256xi1>, vector<4x256xf32>
    %c12_62 = arith.constant 12 : index
    %c0_63 = arith.constant 0 : index
    %116 = vector.load %arg16[%c12_62, %c0_63] : memref<36x256xf32, #tpu.memory_space<vmem>>, vector<4x256xf32>
    tpu.vector_store %arg16[%c12_62, %c0_63], %115 {strides = array<i32>} : memref<36x256xf32, #tpu.memory_space<vmem>>, vector<4x256xf32>,
    %c16_64 = arith.constant 16 : index
    %c0_65 = arith.constant 0 : index
    %117 = vector.load %arg16[%c16_64, %c0_65] : memref<36x256xf32, #tpu.memory_space<vmem>>, vector<4x256xf32>
    tpu.vector_store %arg16[%c16_64, %c0_65], %3 {strides = array<i32>} : memref<36x256xf32, #tpu.memory_space<vmem>>, vector<4x256xf32>,
    %c255_i32_66 = arith.constant 255 : i32
    %118 = tpu.dynamic_rotate %3 by %c255_i32_66 dim 1 : vector<4x256xf32>, i32 -> vector<4x256xf32>
    %cst_67 = arith.constant 0.000000e+00 : f32
    %119 = vector.shape_cast %47 : vector<1x256xi1> to vector<1x256xi1>
    %120 = vector.broadcast %119 : vector<1x256xi1> to vector<4x256xi1>
    %121 = vector.broadcast %cst_67 : f32 to vector<4x256xf32>
    %122 = arith.select %120, %118, %121 : vector<4x256xi1>, vector<4x256xf32>
    %c20_68 = arith.constant 20 : index
    %c0_69 = arith.constant 0 : index
    %123 = vector.load %arg16[%c20_68, %c0_69] : memref<36x256xf32, #tpu.memory_space<vmem>>, vector<4x256xf32>
    tpu.vector_store %arg16[%c20_68, %c0_69], %122 {strides = array<i32>} : memref<36x256xf32, #tpu.memory_space<vmem>>, vector<4x256xf32>,
    %c241_i32_70 = arith.constant 241 : i32
    %124 = tpu.dynamic_rotate %3 by %c241_i32_70 dim 1 : vector<4x256xf32>, i32 -> vector<4x256xf32>
    %cst_71 = arith.constant 0.000000e+00 : f32
    %125 = vector.shape_cast %58 : vector<1x256xi1> to vector<1x256xi1>
    %126 = vector.broadcast %125 : vector<1x256xi1> to vector<4x256xi1>
    %127 = vector.broadcast %cst_71 : f32 to vector<4x256xf32>
    %128 = arith.select %126, %124, %127 : vector<4x256xi1>, vector<4x256xf32>
    %c24_72 = arith.constant 24 : index
    %c0_73 = arith.constant 0 : index
    %129 = vector.load %arg16[%c24_72, %c0_73] : memref<36x256xf32, #tpu.memory_space<vmem>>, vector<4x256xf32>
    tpu.vector_store %arg16[%c24_72, %c0_73], %128 {strides = array<i32>} : memref<36x256xf32, #tpu.memory_space<vmem>>, vector<4x256xf32>,
    %c240_i32_74 = arith.constant 240 : i32
    %130 = tpu.dynamic_rotate %3 by %c240_i32_74 dim 1 : vector<4x256xf32>, i32 -> vector<4x256xf32>
    %cst_75 = arith.constant 0.000000e+00 : f32
    %131 = vector.shape_cast %66 : vector<1x256xi1> to vector<1x256xi1>
    %132 = vector.broadcast %131 : vector<1x256xi1> to vector<4x256xi1>
    %133 = vector.broadcast %cst_75 : f32 to vector<4x256xf32>
    %134 = arith.select %132, %130, %133 : vector<4x256xi1>, vector<4x256xf32>
    %c28_76 = arith.constant 28 : index
    %c0_77 = arith.constant 0 : index
    %135 = vector.load %arg16[%c28_76, %c0_77] : memref<36x256xf32, #tpu.memory_space<vmem>>, vector<4x256xf32>
    tpu.vector_store %arg16[%c28_76, %c0_77], %134 {strides = array<i32>} : memref<36x256xf32, #tpu.memory_space<vmem>>, vector<4x256xf32>,
    %c239_i32_78 = arith.constant 239 : i32
    %136 = tpu.dynamic_rotate %3 by %c239_i32_78 dim 1 : vector<4x256xf32>, i32 -> vector<4x256xf32>
    %cst_79 = arith.constant 0.000000e+00 : f32
    %137 = vector.shape_cast %77 : vector<1x256xi1> to vector<1x256xi1>
    %138 = vector.broadcast %137 : vector<1x256xi1> to vector<4x256xi1>
    %139 = vector.broadcast %cst_79 : f32 to vector<4x256xf32>
    %140 = arith.select %138, %136, %139 : vector<4x256xi1>, vector<4x256xf32>
    %c32_80 = arith.constant 32 : index
    %c0_81 = arith.constant 0 : index
    %141 = vector.load %arg16[%c32_80, %c0_81] : memref<36x256xf32, #tpu.memory_space<vmem>>, vector<4x256xf32>
    tpu.vector_store %arg16[%c32_80, %c0_81], %140 {strides = array<i32>} : memref<36x256xf32, #tpu.memory_space<vmem>>, vector<4x256xf32>,
    %c0_82 = arith.constant 0 : index
    %c0_83 = arith.constant 0 : index
    %142 = vector.load %arg16[%c0_82, %c0_83] : memref<36x256xf32, #tpu.memory_space<vmem>>, vector<36x256xf32>
    %cst_84 = arith.constant dense<0.000000e+00> : vector<4x256xf32>
    %143 = tpu.matmul %91, %142, %cst_84 {dimension_numbers = #tpu.dot_dimension_numbers<[1], [0], [0], [1], [0, 0, 1, 1], [], []>} : vector<4x36xf32>, vector<36x256xf32>, vector<4x256xf32> -> vector<4x256xf32>
    %144 = vector.broadcast %92 : vector<4x1xf32> to vector<4x256xf32>
    %145 = arith.addf %143, %144 : vector<4x256xf32>
    %cst_85 = arith.constant 0.000000e+00 : f32
    %146 = vector.broadcast %cst_85 : f32 to vector<4x256xf32>
    %147 = arith.maximumf %145, %146 : vector<4x256xf32>
    %cst_86 = arith.constant 6.000000e+00 : f32
    %148 = vector.broadcast %cst_86 : f32 to vector<4x256xf32>
    %149 = arith.minimumf %147, %148 : vector<4x256xf32>
    %c0_87 = arith.constant 0 : index
    %c0_88 = arith.constant 0 : index
    %150 = vector.load %arg9[%c0_87, %c0_88] : memref<4x36xf32, #tpu.memory_space<vmem>>, vector<4x36xf32>
    %c0_89 = arith.constant 0 : index
    %c0_90 = arith.constant 0 : index
    %151 = vector.load %arg10[%c0_89, %c0_90] : memref<4x1xf32, #tpu.memory_space<vmem>>, vector<4x1xf32>
    %c17_i32_91 = arith.constant 17 : i32
    %152 = tpu.dynamic_rotate %149 by %c17_i32_91 dim 1 : vector<4x256xf32>, i32 -> vector<4x256xf32>
    %cst_92 = arith.constant 0.000000e+00 : f32
    %153 = vector.shape_cast %11 : vector<1x256xi1> to vector<1x256xi1>
    %154 = vector.broadcast %153 : vector<1x256xi1> to vector<4x256xi1>
    %155 = vector.broadcast %cst_92 : f32 to vector<4x256xf32>
    %156 = arith.select %154, %152, %155 : vector<4x256xi1>, vector<4x256xf32>
    %c0_93 = arith.constant 0 : index
    %c0_94 = arith.constant 0 : index
    %157 = vector.load %arg16[%c0_93, %c0_94] : memref<36x256xf32, #tpu.memory_space<vmem>>, vector<4x256xf32>
    tpu.vector_store %arg16[%c0_93, %c0_94], %156 {strides = array<i32>} : memref<36x256xf32, #tpu.memory_space<vmem>>, vector<4x256xf32>,
    %c16_i32_95 = arith.constant 16 : i32
    %158 = tpu.dynamic_rotate %149 by %c16_i32_95 dim 1 : vector<4x256xf32>, i32 -> vector<4x256xf32>
    %cst_96 = arith.constant 0.000000e+00 : f32
    %159 = vector.shape_cast %19 : vector<1x256xi1> to vector<1x256xi1>
    %160 = vector.broadcast %159 : vector<1x256xi1> to vector<4x256xi1>
    %161 = vector.broadcast %cst_96 : f32 to vector<4x256xf32>
    %162 = arith.select %160, %158, %161 : vector<4x256xi1>, vector<4x256xf32>
    %c4_97 = arith.constant 4 : index
    %c0_98 = arith.constant 0 : index
    %163 = vector.load %arg16[%c4_97, %c0_98] : memref<36x256xf32, #tpu.memory_space<vmem>>, vector<4x256xf32>
    tpu.vector_store %arg16[%c4_97, %c0_98], %162 {strides = array<i32>} : memref<36x256xf32, #tpu.memory_space<vmem>>, vector<4x256xf32>,
    %c15_i32_99 = arith.constant 15 : i32
    %164 = tpu.dynamic_rotate %149 by %c15_i32_99 dim 1 : vector<4x256xf32>, i32 -> vector<4x256xf32>
    %cst_100 = arith.constant 0.000000e+00 : f32
    %165 = vector.shape_cast %30 : vector<1x256xi1> to vector<1x256xi1>
    %166 = vector.broadcast %165 : vector<1x256xi1> to vector<4x256xi1>
    %167 = vector.broadcast %cst_100 : f32 to vector<4x256xf32>
    %168 = arith.select %166, %164, %167 : vector<4x256xi1>, vector<4x256xf32>
    %c8_101 = arith.constant 8 : index
    %c0_102 = arith.constant 0 : index
    %169 = vector.load %arg16[%c8_101, %c0_102] : memref<36x256xf32, #tpu.memory_space<vmem>>, vector<4x256xf32>
    tpu.vector_store %arg16[%c8_101, %c0_102], %168 {strides = array<i32>} : memref<36x256xf32, #tpu.memory_space<vmem>>, vector<4x256xf32>,
    %c1_i32_103 = arith.constant 1 : i32
    %170 = tpu.dynamic_rotate %149 by %c1_i32_103 dim 1 : vector<4x256xf32>, i32 -> vector<4x256xf32>
    %cst_104 = arith.constant 0.000000e+00 : f32
    %171 = vector.shape_cast %38 : vector<1x256xi1> to vector<1x256xi1>
    %172 = vector.broadcast %171 : vector<1x256xi1> to vector<4x256xi1>
    %173 = vector.broadcast %cst_104 : f32 to vector<4x256xf32>
    %174 = arith.select %172, %170, %173 : vector<4x256xi1>, vector<4x256xf32>
    %c12_105 = arith.constant 12 : index
    %c0_106 = arith.constant 0 : index
    %175 = vector.load %arg16[%c12_105, %c0_106] : memref<36x256xf32, #tpu.memory_space<vmem>>, vector<4x256xf32>
    tpu.vector_store %arg16[%c12_105, %c0_106], %174 {strides = array<i32>} : memref<36x256xf32, #tpu.memory_space<vmem>>, vector<4x256xf32>,
    %c16_107 = arith.constant 16 : index
    %c0_108 = arith.constant 0 : index
    %176 = vector.load %arg16[%c16_107, %c0_108] : memref<36x256xf32, #tpu.memory_space<vmem>>, vector<4x256xf32>
    tpu.vector_store %arg16[%c16_107, %c0_108], %149 {strides = array<i32>} : memref<36x256xf32, #tpu.memory_space<vmem>>, vector<4x256xf32>,
    %c255_i32_109 = arith.constant 255 : i32
    %177 = tpu.dynamic_rotate %149 by %c255_i32_109 dim 1 : vector<4x256xf32>, i32 -> vector<4x256xf32>
    %cst_110 = arith.constant 0.000000e+00 : f32
    %178 = vector.shape_cast %47 : vector<1x256xi1> to vector<1x256xi1>
    %179 = vector.broadcast %178 : vector<1x256xi1> to vector<4x256xi1>
    %180 = vector.broadcast %cst_110 : f32 to vector<4x256xf32>
    %181 = arith.select %179, %177, %180 : vector<4x256xi1>, vector<4x256xf32>
    %c20_111 = arith.constant 20 : index
    %c0_112 = arith.constant 0 : index
    %182 = vector.load %arg16[%c20_111, %c0_112] : memref<36x256xf32, #tpu.memory_space<vmem>>, vector<4x256xf32>
    tpu.vector_store %arg16[%c20_111, %c0_112], %181 {strides = array<i32>} : memref<36x256xf32, #tpu.memory_space<vmem>>, vector<4x256xf32>,
    %c241_i32_113 = arith.constant 241 : i32
    %183 = tpu.dynamic_rotate %149 by %c241_i32_113 dim 1 : vector<4x256xf32>, i32 -> vector<4x256xf32>
    %cst_114 = arith.constant 0.000000e+00 : f32
    %184 = vector.shape_cast %58 : vector<1x256xi1> to vector<1x256xi1>
    %185 = vector.broadcast %184 : vector<1x256xi1> to vector<4x256xi1>
    %186 = vector.broadcast %cst_114 : f32 to vector<4x256xf32>
    %187 = arith.select %185, %183, %186 : vector<4x256xi1>, vector<4x256xf32>
    %c24_115 = arith.constant 24 : index
    %c0_116 = arith.constant 0 : index
    %188 = vector.load %arg16[%c24_115, %c0_116] : memref<36x256xf32, #tpu.memory_space<vmem>>, vector<4x256xf32>
    tpu.vector_store %arg16[%c24_115, %c0_116], %187 {strides = array<i32>} : memref<36x256xf32, #tpu.memory_space<vmem>>, vector<4x256xf32>,
    %c240_i32_117 = arith.constant 240 : i32
    %189 = tpu.dynamic_rotate %149 by %c240_i32_117 dim 1 : vector<4x256xf32>, i32 -> vector<4x256xf32>
    %cst_118 = arith.constant 0.000000e+00 : f32
    %190 = vector.shape_cast %66 : vector<1x256xi1> to vector<1x256xi1>
    %191 = vector.broadcast %190 : vector<1x256xi1> to vector<4x256xi1>
    %192 = vector.broadcast %cst_118 : f32 to vector<4x256xf32>
    %193 = arith.select %191, %189, %192 : vector<4x256xi1>, vector<4x256xf32>
    %c28_119 = arith.constant 28 : index
    %c0_120 = arith.constant 0 : index
    %194 = vector.load %arg16[%c28_119, %c0_120] : memref<36x256xf32, #tpu.memory_space<vmem>>, vector<4x256xf32>
    tpu.vector_store %arg16[%c28_119, %c0_120], %193 {strides = array<i32>} : memref<36x256xf32, #tpu.memory_space<vmem>>, vector<4x256xf32>,
    %c239_i32_121 = arith.constant 239 : i32
    %195 = tpu.dynamic_rotate %149 by %c239_i32_121 dim 1 : vector<4x256xf32>, i32 -> vector<4x256xf32>
    %cst_122 = arith.constant 0.000000e+00 : f32
    %196 = vector.shape_cast %77 : vector<1x256xi1> to vector<1x256xi1>
    %197 = vector.broadcast %196 : vector<1x256xi1> to vector<4x256xi1>
    %198 = vector.broadcast %cst_122 : f32 to vector<4x256xf32>
    %199 = arith.select %197, %195, %198 : vector<4x256xi1>, vector<4x256xf32>
    %c32_123 = arith.constant 32 : index
    %c0_124 = arith.constant 0 : index
    %200 = vector.load %arg16[%c32_123, %c0_124] : memref<36x256xf32, #tpu.memory_space<vmem>>, vector<4x256xf32>
    tpu.vector_store %arg16[%c32_123, %c0_124], %199 {strides = array<i32>} : memref<36x256xf32, #tpu.memory_space<vmem>>, vector<4x256xf32>,
    %c0_125 = arith.constant 0 : index
    %c0_126 = arith.constant 0 : index
    %201 = vector.load %arg16[%c0_125, %c0_126] : memref<36x256xf32, #tpu.memory_space<vmem>>, vector<36x256xf32>
    %cst_127 = arith.constant dense<0.000000e+00> : vector<4x256xf32>
    %202 = tpu.matmul %150, %201, %cst_127 {dimension_numbers = #tpu.dot_dimension_numbers<[1], [0], [0], [1], [0, 0, 1, 1], [], []>} : vector<4x36xf32>, vector<36x256xf32>, vector<4x256xf32> -> vector<4x256xf32>
    %203 = vector.broadcast %151 : vector<4x1xf32> to vector<4x256xf32>
    %204 = arith.addf %202, %203 : vector<4x256xf32>
    %cst_128 = arith.constant 0.000000e+00 : f32
    %205 = vector.broadcast %cst_128 : f32 to vector<4x256xf32>
    %206 = arith.maximumf %204, %205 : vector<4x256xf32>
    %cst_129 = arith.constant 6.000000e+00 : f32
    %207 = vector.broadcast %cst_129 : f32 to vector<4x256xf32>
    %208 = arith.minimumf %206, %207 : vector<4x256xf32>
    %c0_130 = arith.constant 0 : index
    %c0_131 = arith.constant 0 : index
    %209 = vector.load %arg12[%c0_130, %c0_131] : memref<4x36xf32, #tpu.memory_space<vmem>>, vector<4x36xf32>
    %c0_132 = arith.constant 0 : index
    %c0_133 = arith.constant 0 : index
    %210 = vector.load %arg13[%c0_132, %c0_133] : memref<4x1xf32, #tpu.memory_space<vmem>>, vector<4x1xf32>
    %c17_i32_134 = arith.constant 17 : i32
    %211 = tpu.dynamic_rotate %208 by %c17_i32_134 dim 1 : vector<4x256xf32>, i32 -> vector<4x256xf32>
    %cst_135 = arith.constant 0.000000e+00 : f32
    %212 = vector.shape_cast %11 : vector<1x256xi1> to vector<1x256xi1>
    %213 = vector.broadcast %212 : vector<1x256xi1> to vector<4x256xi1>
    %214 = vector.broadcast %cst_135 : f32 to vector<4x256xf32>
    %215 = arith.select %213, %211, %214 : vector<4x256xi1>, vector<4x256xf32>
    %c0_136 = arith.constant 0 : index
    %c0_137 = arith.constant 0 : index
    %216 = vector.load %arg16[%c0_136, %c0_137] : memref<36x256xf32, #tpu.memory_space<vmem>>, vector<4x256xf32>
    tpu.vector_store %arg16[%c0_136, %c0_137], %215 {strides = array<i32>} : memref<36x256xf32, #tpu.memory_space<vmem>>, vector<4x256xf32>,
    %c16_i32_138 = arith.constant 16 : i32
    %217 = tpu.dynamic_rotate %208 by %c16_i32_138 dim 1 : vector<4x256xf32>, i32 -> vector<4x256xf32>
    %cst_139 = arith.constant 0.000000e+00 : f32
    %218 = vector.shape_cast %19 : vector<1x256xi1> to vector<1x256xi1>
    %219 = vector.broadcast %218 : vector<1x256xi1> to vector<4x256xi1>
    %220 = vector.broadcast %cst_139 : f32 to vector<4x256xf32>
    %221 = arith.select %219, %217, %220 : vector<4x256xi1>, vector<4x256xf32>
    %c4_140 = arith.constant 4 : index
    %c0_141 = arith.constant 0 : index
    %222 = vector.load %arg16[%c4_140, %c0_141] : memref<36x256xf32, #tpu.memory_space<vmem>>, vector<4x256xf32>
    tpu.vector_store %arg16[%c4_140, %c0_141], %221 {strides = array<i32>} : memref<36x256xf32, #tpu.memory_space<vmem>>, vector<4x256xf32>,
    %c15_i32_142 = arith.constant 15 : i32
    %223 = tpu.dynamic_rotate %208 by %c15_i32_142 dim 1 : vector<4x256xf32>, i32 -> vector<4x256xf32>
    %cst_143 = arith.constant 0.000000e+00 : f32
    %224 = vector.shape_cast %30 : vector<1x256xi1> to vector<1x256xi1>
    %225 = vector.broadcast %224 : vector<1x256xi1> to vector<4x256xi1>
    %226 = vector.broadcast %cst_143 : f32 to vector<4x256xf32>
    %227 = arith.select %225, %223, %226 : vector<4x256xi1>, vector<4x256xf32>
    %c8_144 = arith.constant 8 : index
    %c0_145 = arith.constant 0 : index
    %228 = vector.load %arg16[%c8_144, %c0_145] : memref<36x256xf32, #tpu.memory_space<vmem>>, vector<4x256xf32>
    tpu.vector_store %arg16[%c8_144, %c0_145], %227 {strides = array<i32>} : memref<36x256xf32, #tpu.memory_space<vmem>>, vector<4x256xf32>,
    %c1_i32_146 = arith.constant 1 : i32
    %229 = tpu.dynamic_rotate %208 by %c1_i32_146 dim 1 : vector<4x256xf32>, i32 -> vector<4x256xf32>
    %cst_147 = arith.constant 0.000000e+00 : f32
    %230 = vector.shape_cast %38 : vector<1x256xi1> to vector<1x256xi1>
    %231 = vector.broadcast %230 : vector<1x256xi1> to vector<4x256xi1>
    %232 = vector.broadcast %cst_147 : f32 to vector<4x256xf32>
    %233 = arith.select %231, %229, %232 : vector<4x256xi1>, vector<4x256xf32>
    %c12_148 = arith.constant 12 : index
    %c0_149 = arith.constant 0 : index
    %234 = vector.load %arg16[%c12_148, %c0_149] : memref<36x256xf32, #tpu.memory_space<vmem>>, vector<4x256xf32>
    tpu.vector_store %arg16[%c12_148, %c0_149], %233 {strides = array<i32>} : memref<36x256xf32, #tpu.memory_space<vmem>>, vector<4x256xf32>,
    %c16_150 = arith.constant 16 : index
    %c0_151 = arith.constant 0 : index
    %235 = vector.load %arg16[%c16_150, %c0_151] : memref<36x256xf32, #tpu.memory_space<vmem>>, vector<4x256xf32>
    tpu.vector_store %arg16[%c16_150, %c0_151], %208 {strides = array<i32>} : memref<36x256xf32, #tpu.memory_space<vmem>>, vector<4x256xf32>,
    %c255_i32_152 = arith.constant 255 : i32
    %236 = tpu.dynamic_rotate %208 by %c255_i32_152 dim 1 : vector<4x256xf32>, i32 -> vector<4x256xf32>
    %cst_153 = arith.constant 0.000000e+00 : f32
    %237 = vector.shape_cast %47 : vector<1x256xi1> to vector<1x256xi1>
    %238 = vector.broadcast %237 : vector<1x256xi1> to vector<4x256xi1>
    %239 = vector.broadcast %cst_153 : f32 to vector<4x256xf32>
    %240 = arith.select %238, %236, %239 : vector<4x256xi1>, vector<4x256xf32>
    %c20_154 = arith.constant 20 : index
    %c0_155 = arith.constant 0 : index
    %241 = vector.load %arg16[%c20_154, %c0_155] : memref<36x256xf32, #tpu.memory_space<vmem>>, vector<4x256xf32>
    tpu.vector_store %arg16[%c20_154, %c0_155], %240 {strides = array<i32>} : memref<36x256xf32, #tpu.memory_space<vmem>>, vector<4x256xf32>,
    %c241_i32_156 = arith.constant 241 : i32
    %242 = tpu.dynamic_rotate %208 by %c241_i32_156 dim 1 : vector<4x256xf32>, i32 -> vector<4x256xf32>
    %cst_157 = arith.constant 0.000000e+00 : f32
    %243 = vector.shape_cast %58 : vector<1x256xi1> to vector<1x256xi1>
    %244 = vector.broadcast %243 : vector<1x256xi1> to vector<4x256xi1>
    %245 = vector.broadcast %cst_157 : f32 to vector<4x256xf32>
    %246 = arith.select %244, %242, %245 : vector<4x256xi1>, vector<4x256xf32>
    %c24_158 = arith.constant 24 : index
    %c0_159 = arith.constant 0 : index
    %247 = vector.load %arg16[%c24_158, %c0_159] : memref<36x256xf32, #tpu.memory_space<vmem>>, vector<4x256xf32>
    tpu.vector_store %arg16[%c24_158, %c0_159], %246 {strides = array<i32>} : memref<36x256xf32, #tpu.memory_space<vmem>>, vector<4x256xf32>,
    %c240_i32_160 = arith.constant 240 : i32
    %248 = tpu.dynamic_rotate %208 by %c240_i32_160 dim 1 : vector<4x256xf32>, i32 -> vector<4x256xf32>
    %cst_161 = arith.constant 0.000000e+00 : f32
    %249 = vector.shape_cast %66 : vector<1x256xi1> to vector<1x256xi1>
    %250 = vector.broadcast %249 : vector<1x256xi1> to vector<4x256xi1>
    %251 = vector.broadcast %cst_161 : f32 to vector<4x256xf32>
    %252 = arith.select %250, %248, %251 : vector<4x256xi1>, vector<4x256xf32>
    %c28_162 = arith.constant 28 : index
    %c0_163 = arith.constant 0 : index
    %253 = vector.load %arg16[%c28_162, %c0_163] : memref<36x256xf32, #tpu.memory_space<vmem>>, vector<4x256xf32>
    tpu.vector_store %arg16[%c28_162, %c0_163], %252 {strides = array<i32>} : memref<36x256xf32, #tpu.memory_space<vmem>>, vector<4x256xf32>,
    %c239_i32_164 = arith.constant 239 : i32
    %254 = tpu.dynamic_rotate %208 by %c239_i32_164 dim 1 : vector<4x256xf32>, i32 -> vector<4x256xf32>
    %cst_165 = arith.constant 0.000000e+00 : f32
    %255 = vector.shape_cast %77 : vector<1x256xi1> to vector<1x256xi1>
    %256 = vector.broadcast %255 : vector<1x256xi1> to vector<4x256xi1>
    %257 = vector.broadcast %cst_165 : f32 to vector<4x256xf32>
    %258 = arith.select %256, %254, %257 : vector<4x256xi1>, vector<4x256xf32>
    %c32_166 = arith.constant 32 : index
    %c0_167 = arith.constant 0 : index
    %259 = vector.load %arg16[%c32_166, %c0_167] : memref<36x256xf32, #tpu.memory_space<vmem>>, vector<4x256xf32>
    tpu.vector_store %arg16[%c32_166, %c0_167], %258 {strides = array<i32>} : memref<36x256xf32, #tpu.memory_space<vmem>>, vector<4x256xf32>,
    %c0_168 = arith.constant 0 : index
    %c0_169 = arith.constant 0 : index
    %260 = vector.load %arg16[%c0_168, %c0_169] : memref<36x256xf32, #tpu.memory_space<vmem>>, vector<36x256xf32>
    %cst_170 = arith.constant dense<0.000000e+00> : vector<4x256xf32>
    %261 = tpu.matmul %209, %260, %cst_170 {dimension_numbers = #tpu.dot_dimension_numbers<[1], [0], [0], [1], [0, 0, 1, 1], [], []>} : vector<4x36xf32>, vector<36x256xf32>, vector<4x256xf32> -> vector<4x256xf32>
    %262 = vector.broadcast %210 : vector<4x1xf32> to vector<4x256xf32>
    %263 = arith.addf %261, %262 : vector<4x256xf32>
    %cst_171 = arith.constant 0.000000e+00 : f32
    %264 = vector.broadcast %cst_171 : f32 to vector<4x256xf32>
    %265 = arith.maximumf %263, %264 : vector<4x256xf32>
    %cst_172 = arith.constant 6.000000e+00 : f32
    %266 = vector.broadcast %cst_172 : f32 to vector<4x256xf32>
    %267 = arith.minimumf %265, %266 : vector<4x256xf32>
    %c0_173 = arith.constant 0 : index
    %c0_174 = arith.constant 0 : index
    %c0_175 = arith.constant 0 : index
    %c0_176 = arith.constant 0 : index
    %268 = vector.load %arg15[%c0_173, %c0_174, %c0_175, %c0_176] : memref<1x4x2x256xf32, #tpu.memory_space<vmem>>, vector<1x4x1x256xf32>
    %269 = vector.shape_cast %268 : vector<1x4x1x256xf32> to vector<4x256xf32>
    %270 = vector.shape_cast %90 : vector<4x256xf32> to vector<1x4x1x256xf32>
    tpu.vector_store %arg15[%c0_173, %c0_174, %c0_175, %c0_176], %270 {strides = array<i32>} : memref<1x4x2x256xf32, #tpu.memory_space<vmem>>, vector<1x4x1x256xf32>,
    %c0_177 = arith.constant 0 : index
    %c0_178 = arith.constant 0 : index
    %c1_179 = arith.constant 1 : index
    %c0_180 = arith.constant 0 : index
    %271 = vector.load %arg15[%c0_177, %c0_178, %c1_179, %c0_180] : memref<1x4x2x256xf32, #tpu.memory_space<vmem>>, vector<1x4x1x256xf32>
    %272 = vector.shape_cast %271 : vector<1x4x1x256xf32> to vector<4x256xf32>
    %273 = vector.shape_cast %267 : vector<4x256xf32> to vector<1x4x1x256xf32>
    tpu.vector_store %arg15[%c0_177, %c0_178, %c1_179, %c0_180], %273 {strides = array<i32>} : memref<1x4x2x256xf32, #tpu.memory_space<vmem>>, vector<1x4x1x256xf32>,
    return
  }
  func.func @transform_0(%arg0: i32) -> (i32, i32, i32, i32) {
    %c0_i32 = arith.constant 0 : i32
    %c0_i32_0 = arith.constant 0 : i32
    %c0_i32_1 = arith.constant 0 : i32
    %c0_i32_2 = arith.constant 0 : i32
    return %c0_i32, %arg0, %c0_i32_0, %c0_i32_1 : i32, i32, i32, i32
  }
  func.func @transform_1(%arg0: i32) -> (i32, i32) {
    %c0_i32 = arith.constant 0 : i32
    %c0_i32_0 = arith.constant 0 : i32
    %c0_i32_1 = arith.constant 0 : i32
    return %c0_i32, %c0_i32_0 : i32, i32
  }
  func.func @transform_2(%arg0: i32) -> (i32, i32) {
    %c0_i32 = arith.constant 0 : i32
    %c0_i32_0 = arith.constant 0 : i32
    %c0_i32_1 = arith.constant 0 : i32
    return %c0_i32, %c0_i32_0 : i32, i32
  }
  func.func @transform_3(%arg0: i32) -> (i32, i32) {
    %c0_i32 = arith.constant 0 : i32
    %c0_i32_0 = arith.constant 0 : i32
    %c0_i32_1 = arith.constant 0 : i32
    return %c0_i32, %c0_i32_0 : i32, i32
  }
  func.func @transform_4(%arg0: i32) -> (i32, i32) {
    %c0_i32 = arith.constant 0 : i32
    %c0_i32_0 = arith.constant 0 : i32
    %c0_i32_1 = arith.constant 0 : i32
    return %c0_i32, %c0_i32_0 : i32, i32
  }
  func.func @transform_5(%arg0: i32) -> (i32, i32) {
    %c0_i32 = arith.constant 0 : i32
    %c0_i32_0 = arith.constant 0 : i32
    %c0_i32_1 = arith.constant 0 : i32
    return %c0_i32, %c0_i32_0 : i32, i32
  }
  func.func @transform_6(%arg0: i32) -> (i32, i32) {
    %c0_i32 = arith.constant 0 : i32
    %c0_i32_0 = arith.constant 0 : i32
    %c0_i32_1 = arith.constant 0 : i32
    return %c0_i32, %c0_i32_0 : i32, i32
  }
  func.func @transform_7(%arg0: i32) -> (i32, i32) {
    %c0_i32 = arith.constant 0 : i32
    %c0_i32_0 = arith.constant 0 : i32
    %c0_i32_1 = arith.constant 0 : i32
    return %c0_i32, %c0_i32_0 : i32, i32
  }
  func.func @transform_8(%arg0: i32) -> (i32, i32) {
    %c0_i32 = arith.constant 0 : i32
    %c0_i32_0 = arith.constant 0 : i32
    %c0_i32_1 = arith.constant 0 : i32
    return %c0_i32, %c0_i32_0 : i32, i32
  }
  func.func @transform_9(%arg0: i32) -> (i32, i32) {
    %c0_i32 = arith.constant 0 : i32
    %c0_i32_0 = arith.constant 0 : i32
    %c0_i32_1 = arith.constant 0 : i32
    return %c0_i32, %c0_i32_0 : i32, i32
  }
  func.func @transform_10(%arg0: i32) -> (i32, i32) {
    %c0_i32 = arith.constant 0 : i32
    %c0_i32_0 = arith.constant 0 : i32
    %c0_i32_1 = arith.constant 0 : i32
    return %c0_i32, %c0_i32_0 : i32, i32
  }
  func.func @transform_11(%arg0: i32) -> (i32, i32) {
    %c0_i32 = arith.constant 0 : i32
    %c0_i32_0 = arith.constant 0 : i32
    %c0_i32_1 = arith.constant 0 : i32
    return %c0_i32, %c0_i32_0 : i32, i32
  }
  func.func @transform_12(%arg0: i32) -> (i32, i32) {
    %c0_i32 = arith.constant 0 : i32
    %c0_i32_0 = arith.constant 0 : i32
    %c0_i32_1 = arith.constant 0 : i32
    return %c0_i32, %c0_i32_0 : i32, i32
  }
  func.func @transform_13(%arg0: i32) -> (i32, i32) {
    %c0_i32 = arith.constant 0 : i32
    %c0_i32_0 = arith.constant 0 : i32
    %c0_i32_1 = arith.constant 0 : i32
    return %c0_i32, %c0_i32_0 : i32, i32
  }
  func.func @transform_14(%arg0: i32) -> (i32, i32, i32, i32) {
    %c0_i32 = arith.constant 0 : i32
    %c0_i32_0 = arith.constant 0 : i32
    %c0_i32_1 = arith.constant 0 : i32
    %c0_i32_2 = arith.constant 0 : i32
    return %arg0, %c0_i32, %c0_i32_0, %c0_i32_1 : i32, i32, i32, i32
  }
}

</mosaic_0001>

<llo_original>
// kernel: shuffle_block_x_forward.1
$region0: #{shuffle_block_x_forward.1}
  #allocation0 [shape = 'u32[]', space=smem, size = 0x4, offset = 0x4, fixed_abs, tag = 'smem constant byte address 0x4 - core index']
  #allocation1 [shape = 'u32[144,128]{1,0:T(1,128)}', space=vmem, size = 0x12000, scoped, tag = 'internal scratch']
  #allocation2 [shape = 'f32[36,256]{1,0:T(8,128)}', space=vmem, size = 0xa000, scoped, tag = 'scratch operand']
  %s0 = inlined_call_operand.vmem [shape: f32[1,2,4,256], index: 0, kind: input, shape index: {}]
  %s1 = inlined_call_operand.vmem [shape: s32[2,256], index: 1, kind: input, shape index: {}]
  %s2 = inlined_call_operand.vmem [shape: f32[4,36], index: 2, kind: input, shape index: {}]
  %s3 = inlined_call_operand.vmem [shape: f32[4,1], index: 3, kind: input, shape index: {}]
  %s4 = inlined_call_operand.vmem [shape: f32[4,1], index: 4, kind: input, shape index: {}]
  %s5 = inlined_call_operand.vmem [shape: f32[4,36], index: 5, kind: input, shape index: {}]
  %s6 = inlined_call_operand.vmem [shape: f32[4,1], index: 6, kind: input, shape index: {}]
  %s7 = inlined_call_operand.vmem [shape: f32[4,1], index: 7, kind: input, shape index: {}]
  %s8 = inlined_call_operand.vmem [shape: f32[4,36], index: 8, kind: input, shape index: {}]
  %s9 = inlined_call_operand.vmem [shape: f32[4,1], index: 9, kind: input, shape index: {}]
  %s10 = inlined_call_operand.vmem [shape: f32[4,1], index: 10, kind: input, shape index: {}]
  %s11 = inlined_call_operand.vmem [shape: f32[4,36], index: 11, kind: input, shape index: {}]
  %s12 = inlined_call_operand.vmem [shape: f32[4,1], index: 12, kind: input, shape index: {}]
  %s13 = inlined_call_operand.vmem [shape: f32[4,1], index: 13, kind: input, shape index: {}]
  %s14 = inlined_call_operand.vmem [shape: f32[2,4,2,256], index: 14, kind: output, shape index: {}]
  %s15 = sld [smem:[#allocation0]]
  $region89: #{shuffle_block_x_forward.1} parent=0
    _
  %s17 = ssub.s32 1, %s15
  %s18 = scalar_select 0, %s17, %s15
  loop: start=0, step=1, limit=4
  $region2: #{shuffle_block_x_forward.1} parent=0 // loop_pre_header
    _
  $region3: #{shuffle_block_x_forward.1} parent=0 // loop_header
    %s20 = sphi 0, %s24
    %p21 = scmp.ge.s32.totalorder %s20, 4
    %s30 = sphi 0, %s32
    %s33 = sphi 0, %s30
    %s34 = sphi 0, %s33
    %s50 = sphi 0, %s34
    %s54 = sphi 0, %s54
    %s56 = sphi 0, %s54
    %s57 = sphi 0, %s56
    %s71 = sphi 0, %s57
    %s75 = sphi 0, %s75
    %s77 = sphi 0, %s75
    %s78 = sphi 0, %s77
    %s92 = sphi 0, %s78
    %s96 = sphi 0, %s96
    %s98 = sphi 0, %s96
    %s99 = sphi 0, %s98
    %s113 = sphi 0, %s99
    %s117 = sphi 0, %s117
    %s119 = sphi 0, %s117
    %s120 = sphi 0, %s119
    %s134 = sphi 0, %s120
    %s138 = sphi 0, %s138
    %s140 = sphi 0, %s138
    %s141 = sphi 0, %s140
    %s155 = sphi 0, %s141
    %s159 = sphi 0, %s159
    %s161 = sphi 0, %s159
    %s162 = sphi 0, %s161
    %s176 = sphi 0, %s162
    %s180 = sphi 0, %s180
    %s182 = sphi 0, %s180
    %s183 = sphi 0, %s182
    %s197 = sphi 0, %s183
    %s201 = sphi 0, %s201
    %s203 = sphi 0, %s201
    %s204 = sphi 0, %s203
    %s218 = sphi 0, %s204
    %s222 = sphi 0, %s222
    %s224 = sphi 0, %s222
    %s225 = sphi 0, %s224
    %s239 = sphi 0, %s225
    %s243 = sphi 0, %s243
    %s245 = sphi 0, %s243
    %s246 = sphi 0, %s245
    %s260 = sphi 0, %s246
    %s264 = sphi 0, %s264
    %s266 = sphi 0, %s264
    %s267 = sphi 0, %s266
    %s281 = sphi 0, %s267
    %s285 = sphi 0, %s285
    %s287 = sphi 0, %s285
    %s288 = sphi 0, %s287
    %s302 = sphi 0, %s288
    %s306 = sphi 0, %s306
    %s308 = sphi 0, %s306
    %s309 = sphi 0, %s308
    %s323 = sphi 0, %s309
    %s329 = sphi 0, %s331
    %s332 = sphi 0, %s329
    %s333 = sphi 0, %s332
    %s349 = sphi 0, %s333
  $region4: #{shuffle_block_x_forward.1} parent=0 // loop_header_branch
    %23 = sbr.rel (%p21) target = $region8
  $region5: #{shuffle_block_x_forward.1} parent=0 // loop_body
    %s25 = ssub.s32 %s20, 1
    %s26 = ssub.s32 %s20, 2
    %s27 = sadd.s32 %s20, 1
    %s28 = ssub.s32 %s20, %s27
    %p29 = scmp.eq.s32.totalorder %s28, 0
    %s31 = sadd.s32 %s30, 1
    %s32 = scalar_select %p29, %s30, %s31
    %p35 = pneg %p29
    %p36 = scmp.eq.s32.totalorder %s20, 1
    %p37 = por %p35, %p36
    %p38 = scmp.ne.s32.totalorder %s30, %s33
    %p39 = scmp.eq.s32.totalorder %s20, 0
    %p40 = por %p38, %p39
    %p41 = scmp.ne.s32.totalorder %s30, %s33
    %p42 = scmp.eq.s32.totalorder %s25, 1
    %p43 = por %p41, %p42
    %p44 = scmp.ne.s32.totalorder %s33, %s34
    %p45 = scmp.eq.s32.totalorder %s25, 0
    %p46 = por %p44, %p45
    %p47 = scmp.ne.s32.totalorder %s33, %s34
    %p48 = scmp.eq.s32.totalorder %s26, 1
    %p49 = por %p47, %p48
    %p51 = scmp.ne.s32.totalorder %s34, %s50
    %p52 = scmp.eq.s32.totalorder %s26, 0
    %p53 = por %p51, %p52
    %s55 = sadd.s32 %s54, 1
    %p58 = scmp.eq.s32.totalorder %s20, 1
    %p59 = scmp.ne.s32.totalorder %s54, %s56
    %p60 = scmp.eq.s32.totalorder %s20, 0
    %p61 = por %p59, %p60
    %p62 = scmp.ne.s32.totalorder %s54, %s56
    %p63 = scmp.eq.s32.totalorder %s25, 1
    %p64 = por %p62, %p63
    %p65 = scmp.ne.s32.totalorder %s56, %s57
    %p66 = scmp.eq.s32.totalorder %s25, 0
    %p67 = por %p65, %p66
    %p68 = scmp.ne.s32.totalorder %s56, %s57
    %p69 = scmp.eq.s32.totalorder %s26, 1
    %p70 = por %p68, %p69
    %p72 = scmp.ne.s32.totalorder %s57, %s71
    %p73 = scmp.eq.s32.totalorder %s26, 0
    %p74 = por %p72, %p73
    %s76 = sadd.s32 %s75, 1
    %p79 = scmp.eq.s32.totalorder %s20, 1
    %p80 = scmp.ne.s32.totalorder %s75, %s77
    %p81 = scmp.eq.s32.totalorder %s20, 0
    %p82 = por %p80, %p81
    %p83 = scmp.ne.s32.totalorder %s75, %s77
    %p84 = scmp.eq.s32.totalorder %s25, 1
    %p85 = por %p83, %p84
    %p86 = scmp.ne.s32.totalorder %s77, %s78
    %p87 = scmp.eq.s32.totalorder %s25, 0
    %p88 = por %p86, %p87
    %p89 = scmp.ne.s32.totalorder %s77, %s78
    %p90 = scmp.eq.s32.totalorder %s26, 1
    %p91 = por %p89, %p90
    %p93 = scmp.ne.s32.totalorder %s78, %s92
    %p94 = scmp.eq.s32.totalorder %s26, 0
    %p95 = por %p93, %p94
    %s97 = sadd.s32 %s96, 1
    %p100 = scmp.eq.s32.totalorder %s20, 1
    %p101 = scmp.ne.s32.totalorder %s96, %s98
    %p102 = scmp.eq.s32.totalorder %s20, 0
    %p103 = por %p101, %p102
    %p104 = scmp.ne.s32.totalorder %s96, %s98
    %p105 = scmp.eq.s32.totalorder %s25, 1
    %p106 = por %p104, %p105
    %p107 = scmp.ne.s32.totalorder %s98, %s99
    %p108 = scmp.eq.s32.totalorder %s25, 0
    %p109 = por %p107, %p108
    %p110 = scmp.ne.s32.totalorder %s98, %s99
    %p111 = scmp.eq.s32.totalorder %s26, 1
    %p112 = por %p110, %p111
    %p114 = scmp.ne.s32.totalorder %s99, %s113
    %p115 = scmp.eq.s32.totalorder %s26, 0
    %p116 = por %p114, %p115
    %s118 = sadd.s32 %s117, 1
    %p121 = scmp.eq.s32.totalorder %s20, 1
    %p122 = scmp.ne.s32.totalorder %s117, %s119
    %p123 = scmp.eq.s32.totalorder %s20, 0
    %p124 = por %p122, %p123
    %p125 = scmp.ne.s32.totalorder %s117, %s119
    %p126 = scmp.eq.s32.totalorder %s25, 1
    %p127 = por %p125, %p126
    %p128 = scmp.ne.s32.totalorder %s119, %s120
    %p129 = scmp.eq.s32.totalorder %s25, 0
    %p130 = por %p128, %p129
    %p131 = scmp.ne.s32.totalorder %s119, %s120
    %p132 = scmp.eq.s32.totalorder %s26, 1
    %p133 = por %p131, %p132
    %p135 = scmp.ne.s32.totalorder %s120, %s134
    %p136 = scmp.eq.s32.totalorder %s26, 0
    %p137 = por %p135, %p136
    %s139 = sadd.s32 %s138, 1
    %p142 = scmp.eq.s32.totalorder %s20, 1
    %p143 = scmp.ne.s32.totalorder %s138, %s140
    %p144 = scmp.eq.s32.totalorder %s20, 0
    %p145 = por %p143, %p144
    %p146 = scmp.ne.s32.totalorder %s138, %s140
    %p147 = scmp.eq.s32.totalorder %s25, 1
    %p148 = por %p146, %p147
    %p149 = scmp.ne.s32.totalorder %s140, %s141
    %p150 = scmp.eq.s32.totalorder %s25, 0
    %p151 = por %p149, %p150
    %p152 = scmp.ne.s32.totalorder %s140, %s141
    %p153 = scmp.eq.s32.totalorder %s26, 1
    %p154 = por %p152, %p153
    %p156 = scmp.ne.s32.totalorder %s141, %s155
    %p157 = scmp.eq.s32.totalorder %s26, 0
    %p158 = por %p156, %p157
    %s160 = sadd.s32 %s159, 1
    %p163 = scmp.eq.s32.totalorder %s20, 1
    %p164 = scmp.ne.s32.totalorder %s159, %s161
    %p165 = scmp.eq.s32.totalorder %s20, 0
    %p166 = por %p164, %p165
    %p167 = scmp.ne.s32.totalorder %s159, %s161
    %p168 = scmp.eq.s32.totalorder %s25, 1
    %p169 = por %p167, %p168
    %p170 = scmp.ne.s32.totalorder %s161, %s162
    %p171 = scmp.eq.s32.totalorder %s25, 0
    %p172 = por %p170, %p171
    %p173 = scmp.ne.s32.totalorder %s161, %s162
    %p174 = scmp.eq.s32.totalorder %s26, 1
    %p175 = por %p173, %p174
    %p177 = scmp.ne.s32.totalorder %s162, %s176
    %p178 = scmp.eq.s32.totalorder %s26, 0
    %p179 = por %p177, %p178
    %s181 = sadd.s32 %s180, 1
    %p184 = scmp.eq.s32.totalorder %s20, 1
    %p185 = scmp.ne.s32.totalorder %s180, %s182
    %p186 = scmp.eq.s32.totalorder %s20, 0
    %p187 = por %p185, %p186
    %p188 = scmp.ne.s32.totalorder %s180, %s182
    %p189 = scmp.eq.s32.totalorder %s25, 1
    %p190 = por %p188, %p189
    %p191 = scmp.ne.s32.totalorder %s182, %s183
    %p192 = scmp.eq.s32.totalorder %s25, 0
    %p193 = por %p191, %p192
    %p194 = scmp.ne.s32.totalorder %s182, %s183
    %p195 = scmp.eq.s32.totalorder %s26, 1
    %p196 = por %p194, %p195
    %p198 = scmp.ne.s32.totalorder %s183, %s197
    %p199 = scmp.eq.s32.totalorder %s26, 0
    %p200 = por %p198, %p199
    %s202 = sadd.s32 %s201, 1
    %p205 = scmp.eq.s32.totalorder %s20, 1
    %p206 = scmp.ne.s32.totalorder %s201, %s203
    %p207 = scmp.eq.s32.totalorder %s20, 0
    %p208 = por %p206, %p207
    %p209 = scmp.ne.s32.totalorder %s201, %s203
    %p210 = scmp.eq.s32.totalorder %s25, 1
    %p211 = por %p209, %p210
    %p212 = scmp.ne.s32.totalorder %s203, %s204
    %p213 = scmp.eq.s32.totalorder %s25, 0
    %p214 = por %p212, %p213
    %p215 = scmp.ne.s32.totalorder %s203, %s204
    %p216 = scmp.eq.s32.totalorder %s26, 1
    %p217 = por %p215, %p216
    %p219 = scmp.ne.s32.totalorder %s204, %s218
    %p220 = scmp.eq.s32.totalorder %s26, 0
    %p221 = por %p219, %p220
    %s223 = sadd.s32 %s222, 1
    %p226 = scmp.eq.s32.totalorder %s20, 1
    %p227 = scmp.ne.s32.totalorder %s222, %s224
    %p228 = scmp.eq.s32.totalorder %s20, 0
    %p229 = por %p227, %p228
    %p230 = scmp.ne.s32.totalorder %s222, %s224
    %p231 = scmp.eq.s32.totalorder %s25, 1
    %p232 = por %p230, %p231
    %p233 = scmp.ne.s32.totalorder %s224, %s225
    %p234 = scmp.eq.s32.totalorder %s25, 0
    %p235 = por %p233, %p234
    %p236 = scmp.ne.s32.totalorder %s224, %s225
    %p237 = scmp.eq.s32.totalorder %s26, 1
    %p238 = por %p236, %p237
    %p240 = scmp.ne.s32.totalorder %s225, %s239
    %p241 = scmp.eq.s32.totalorder %s26, 0
    %p242 = por %p240, %p241
    %s244 = sadd.s32 %s243, 1
    %p247 = scmp.eq.s32.totalorder %s20, 1
    %p248 = scmp.ne.s32.totalorder %s243, %s245
    %p249 = scmp.eq.s32.totalorder %s20, 0
    %p250 = por %p248, %p249
    %p251 = scmp.ne.s32.totalorder %s243, %s245
    %p252 = scmp.eq.s32.totalorder %s25, 1
    %p253 = por %p251, %p252
    %p254 = scmp.ne.s32.totalorder %s245, %s246
    %p255 = scmp.eq.s32.totalorder %s25, 0
    %p256 = por %p254, %p255
    %p257 = scmp.ne.s32.totalorder %s245, %s246
    %p258 = scmp.eq.s32.totalorder %s26, 1
    %p259 = por %p257, %p258
    %p261 = scmp.ne.s32.totalorder %s246, %s260
    %p262 = scmp.eq.s32.totalorder %s26, 0
    %p263 = por %p261, %p262
    %s265 = sadd.s32 %s264, 1
    %p268 = scmp.eq.s32.totalorder %s20, 1
    %p269 = scmp.ne.s32.totalorder %s264, %s266
    %p270 = scmp.eq.s32.totalorder %s20, 0
    %p271 = por %p269, %p270
    %p272 = scmp.ne.s32.totalorder %s264, %s266
    %p273 = scmp.eq.s32.totalorder %s25, 1
    %p274 = por %p272, %p273
    %p275 = scmp.ne.s32.totalorder %s266, %s267
    %p276 = scmp.eq.s32.totalorder %s25, 0
    %p277 = por %p275, %p276
    %p278 = scmp.ne.s32.totalorder %s266, %s267
    %p279 = scmp.eq.s32.totalorder %s26, 1
    %p280 = por %p278, %p279
    %p282 = scmp.ne.s32.totalorder %s267, %s281
    %p283 = scmp.eq.s32.totalorder %s26, 0
    %p284 = por %p282, %p283
    %s286 = sadd.s32 %s285, 1
    %p289 = scmp.eq.s32.totalorder %s20, 1
    %p290 = scmp.ne.s32.totalorder %s285, %s287
    %p291 = scmp.eq.s32.totalorder %s20, 0
    %p292 = por %p290, %p291
    %p293 = scmp.ne.s32.totalorder %s285, %s287
    %p294 = scmp.eq.s32.totalorder %s25, 1
    %p295 = por %p293, %p294
    %p296 = scmp.ne.s32.totalorder %s287, %s288
    %p297 = scmp.eq.s32.totalorder %s25, 0
    %p298 = por %p296, %p297
    %p299 = scmp.ne.s32.totalorder %s287, %s288
    %p300 = scmp.eq.s32.totalorder %s26, 1
    %p301 = por %p299, %p300
    %p303 = scmp.ne.s32.totalorder %s288, %s302
    %p304 = scmp.eq.s32.totalorder %s26, 0
    %p305 = por %p303, %p304
    %s307 = sadd.s32 %s306, 1
    %p310 = scmp.eq.s32.totalorder %s20, 1
    %p311 = scmp.ne.s32.totalorder %s306, %s308
    %p312 = scmp.eq.s32.totalorder %s20, 0
    %p313 = por %p311, %p312
    %p314 = scmp.ne.s32.totalorder %s306, %s308
    %p315 = scmp.eq.s32.totalorder %s25, 1
    %p316 = por %p314, %p315
    %p317 = scmp.ne.s32.totalorder %s308, %s309
    %p318 = scmp.eq.s32.totalorder %s25, 0
    %p319 = por %p317, %p318
    %p320 = scmp.ne.s32.totalorder %s308, %s309
    %p321 = scmp.eq.s32.totalorder %s26, 1
    %p322 = por %p320, %p321
    %p324 = scmp.ne.s32.totalorder %s309, %s323
    %p325 = scmp.eq.s32.totalorder %s26, 0
    %p326 = por %p324, %p325
    %s327 = ssub.s32 %s20, %s27
    %p328 = scmp.eq.s32.totalorder %s327, 0
    %s330 = sadd.s32 %s329, 1
    %s331 = scalar_select %p328, %s329, %s330
    %p334 = pneg %p328
    %p335 = scmp.eq.s32.totalorder %s20, 1
    %p336 = por %p334, %p335
    %p337 = scmp.ne.s32.totalorder %s329, %s332
    %p338 = scmp.eq.s32.totalorder %s20, 0
    %p339 = por %p337, %p338
    %p340 = scmp.ne.s32.totalorder %s329, %s332
    %p341 = scmp.eq.s32.totalorder %s25, 1
    %p342 = por %p340, %p341
    %p343 = scmp.ne.s32.totalorder %s332, %s333
    %p344 = scmp.eq.s32.totalorder %s25, 0
    %p345 = por %p343, %p344
    %p346 = scmp.ne.s32.totalorder %s332, %s333
    %p347 = scmp.eq.s32.totalorder %s26, 1
    %p348 = por %p346, %p347
    %p350 = scmp.ne.s32.totalorder %s333, %s349
    %p351 = scmp.eq.s32.totalorder %s26, 0
    %p352 = por %p350, %p351
    %p353 = scmp.le.s32.totalorder 1, %s20
    %p354 = scmp.lt.s32.totalorder %s20, 3
    %p355 = pnand %p353, %p354
    %p356 = pneg %p355
    // Predicated region
    $region9: #{shuffle_block_x_forward.1} parent=5 // pred_check
      _
    $region10: #{shuffle_block_x_forward.1} parent=5 // pred_check_branch
      %358 = sbr.rel (%p355) target = $region12
    $region11: #{shuffle_block_x_forward.1} parent=5 // pred_region
      %s359 = ssub.s32 %s20, 1
      // Predicated region
      $region13: #{shuffle_block_x_forward.1} parent=11 // pred_check
        %p360 = pneg %p67
      $region14: #{shuffle_block_x_forward.1} parent=11 // pred_check_branch
        %362 = sbr.rel (%p360) target = $region16
      $region15: #{shuffle_block_x_forward.1} parent=11 // pred_region
        _
      $region16: #{shuffle_block_x_forward.1} parent=11 // pred_fallthru
        _
      // Predicated region
      $region17: #{shuffle_block_x_forward.1} parent=11 // pred_check
        %p363 = pneg %p88
      $region18: #{shuffle_block_x_forward.1} parent=11 // pred_check_branch
        %365 = sbr.rel (%p363) target = $region20
      $region19: #{shuffle_block_x_forward.1} parent=11 // pred_region
        _
      $region20: #{shuffle_block_x_forward.1} parent=11 // pred_fallthru
        _
      // Predicated region
      $region21: #{shuffle_block_x_forward.1} parent=11 // pred_check
        %p366 = pneg %p109
      $region22: #{shuffle_block_x_forward.1} parent=11 // pred_check_branch
        %368 = sbr.rel (%p366) target = $region24
      $region23: #{shuffle_block_x_forward.1} parent=11 // pred_region
        _
      $region24: #{shuffle_block_x_forward.1} parent=11 // pred_fallthru
        _
      // Predicated region
      $region25: #{shuffle_block_x_forward.1} parent=11 // pred_check
        %p369 = pneg %p130
      $region26: #{shuffle_block_x_forward.1} parent=11 // pred_check_branch
        %371 = sbr.rel (%p369) target = $region28
      $region27: #{shuffle_block_x_forward.1} parent=11 // pred_region
        _
      $region28: #{shuffle_block_x_forward.1} parent=11 // pred_fallthru
        _
      // Predicated region
      $region29: #{shuffle_block_x_forward.1} parent=11 // pred_check
        %p372 = pneg %p151
      $region30: #{shuffle_block_x_forward.1} parent=11 // pred_check_branch
        %374 = sbr.rel (%p372) target = $region32
      $region31: #{shuffle_block_x_forward.1} parent=11 // pred_region
        _
      $region32: #{shuffle_block_x_forward.1} parent=11 // pred_fallthru
        _
      // Predicated region
      $region33: #{shuffle_block_x_forward.1} parent=11 // pred_check
        %p375 = pneg %p172
      $region34: #{shuffle_block_x_forward.1} parent=11 // pred_check_branch
        %377 = sbr.rel (%p375) target = $region36
      $region35: #{shuffle_block_x_forward.1} parent=11 // pred_region
        _
      $region36: #{shuffle_block_x_forward.1} parent=11 // pred_fallthru
        _
      // Predicated region
      $region37: #{shuffle_block_x_forward.1} parent=11 // pred_check
        %p378 = pneg %p193
      $region38: #{shuffle_block_x_forward.1} parent=11 // pred_check_branch
        %380 = sbr.rel (%p378) target = $region40
      $region39: #{shuffle_block_x_forward.1} parent=11 // pred_region
        _
      $region40: #{shuffle_block_x_forward.1} parent=11 // pred_fallthru
        _
      // Predicated region
      $region41: #{shuffle_block_x_forward.1} parent=11 // pred_check
        %p381 = pneg %p214
      $region42: #{shuffle_block_x_forward.1} parent=11 // pred_check_branch
        %383 = sbr.rel (%p381) target = $region44
      $region43: #{shuffle_block_x_forward.1} parent=11 // pred_region
        _
      $region44: #{shuffle_block_x_forward.1} parent=11 // pred_fallthru
        _
      // Predicated region
      $region45: #{shuffle_block_x_forward.1} parent=11 // pred_check
        %p384 = pneg %p235
      $region46: #{shuffle_block_x_forward.1} parent=11 // pred_check_branch
        %386 = sbr.rel (%p384) target = $region48
      $region47: #{shuffle_block_x_forward.1} parent=11 // pred_region
        _
      $region48: #{shuffle_block_x_forward.1} parent=11 // pred_fallthru
        _
      // Predicated region
      $region49: #{shuffle_block_x_forward.1} parent=11 // pred_check
        %p387 = pneg %p256
      $region50: #{shuffle_block_x_forward.1} parent=11 // pred_check_branch
        %389 = sbr.rel (%p387) target = $region52
      $region51: #{shuffle_block_x_forward.1} parent=11 // pred_region
        _
      $region52: #{shuffle_block_x_forward.1} parent=11 // pred_fallthru
        _
      // Predicated region
      $region53: #{shuffle_block_x_forward.1} parent=11 // pred_check
        %p390 = pneg %p277
      $region54: #{shuffle_block_x_forward.1} parent=11 // pred_check_branch
        %392 = sbr.rel (%p390) target = $region56
      $region55: #{shuffle_block_x_forward.1} parent=11 // pred_region
        _
      $region56: #{shuffle_block_x_forward.1} parent=11 // pred_fallthru
        _
      // Predicated region
      $region57: #{shuffle_block_x_forward.1} parent=11 // pred_check
        %p393 = pneg %p298
      $region58: #{shuffle_block_x_forward.1} parent=11 // pred_check_branch
        %395 = sbr.rel (%p393) target = $region60
      $region59: #{shuffle_block_x_forward.1} parent=11 // pred_region
        _
      $region60: #{shuffle_block_x_forward.1} parent=11 // pred_fallthru
        _
      // Predicated region
      $region61: #{shuffle_block_x_forward.1} parent=11 // pred_check
        %p396 = pneg %p319
      $region62: #{shuffle_block_x_forward.1} parent=11 // pred_check_branch
        %398 = sbr.rel (%p396) target = $region64
      $region63: #{shuffle_block_x_forward.1} parent=11 // pred_region
        _
      $region64: #{shuffle_block_x_forward.1} parent=11 // pred_fallthru
        _
    $region12: #{shuffle_block_x_forward.1} parent=5 // pred_fallthru
      _
    %p399 = scmp.lt.s32.totalorder %s20, 2
    // Predicated region
    $region65: #{shuffle_block_x_forward.1} parent=5 // pred_check
      %p400 = pneg %p399
    $region66: #{shuffle_block_x_forward.1} parent=5 // pred_check_branch
      %402 = sbr.rel (%p400) target = $region68
    $region67: #{shuffle_block_x_forward.1} parent=5 // pred_region
      // Predicated region
      $region69: #{shuffle_block_x_forward.1} parent=67 // pred_check
        %p403 = pneg %p40
      $region70: #{shuffle_block_x_forward.1} parent=67 // pred_check_branch
        %405 = sbr.rel (%p403) target = $region72
      $region71: #{shuffle_block_x_forward.1} parent=67 // pred_region
        %p406 = scmp.lt.s32.totalorder %s20, 1
        %s407 = scalar_select %p406, %s20, 1
        %s408 = smul.addr %s407, 2
        %s409 = smul.addr %s408, 4
        %s410 = scalar_lea.vmem %s0, %s409
      $region72: #{shuffle_block_x_forward.1} parent=67 // pred_fallthru
        _
    $region68: #{shuffle_block_x_forward.1} parent=5 // pred_fallthru
      _
    %p411 = scmp.le.s32.totalorder 1, %s20
    %p412 = scmp.lt.s32.totalorder %s20, 3
    %p413 = pnand %p411, %p412
    %p414 = pneg %p413
    // Predicated region
    $region73: #{shuffle_block_x_forward.1} parent=5 // pred_check
      _
    $region74: #{shuffle_block_x_forward.1} parent=5 // pred_check_branch
      %416 = sbr.rel (%p413) target = $region76
    $region75: #{shuffle_block_x_forward.1} parent=5 // pred_region
      %s417 = ssub.s32 %s20, 1
      %p418 = scmp.lt.s32.totalorder %s25, 1
      %s419 = scalar_select %p418, %s25, 1
      %s420 = smul.addr %s419, 2
      %s421 = smul.addr %s420, 4
      %s422 = scalar_lea.vmem %s0, %s421
      %p423 = pneg %p46
      %p424 = pneg %p43
      %p425 = pneg %p67
      %p426 = pneg %p64
      %p427 = pneg %p88
      %p428 = pneg %p85
      %p429 = pneg %p109
      %p430 = pneg %p106
      %p431 = pneg %p130
      %p432 = pneg %p127
      %p433 = pneg %p151
      %p434 = pneg %p148
      %p435 = pneg %p172
      %p436 = pneg %p169
      %p437 = pneg %p193
      %p438 = pneg %p190
      %p439 = pneg %p214
      %p440 = pneg %p211
      %p441 = pneg %p235
      %p442 = pneg %p232
      %p443 = pneg %p256
      %p444 = pneg %p253
      %p445 = pneg %p277
      %p446 = pneg %p274
      %p447 = pneg %p298
      %p448 = pneg %p295
      %p449 = pneg %p319
      %p450 = pneg %p316
      %p451 = pneg %p345
      %p452 = pneg %p342
      %p453 = scmp.lt.s32.totalorder %s25, 1
      %s454 = scalar_select %p453, %s25, 1
      %s455 = smul.addr %s454, 8
      %s456 = smul.addr %s455, 2
      %s457 = scalar_lea.vmem %s14, %s456
      %p458 = scmp.lt.s32.totalorder %s25, 1
      %s459 = scalar_select %p458, %s25, 1
      %s460 = smul.addr %s459, 2
      %s461 = smul.addr %s460, 4
      %s462 = scalar_lea.vmem %s0, %s461
      %p463 = scmp.lt.s32.totalorder %s25, 1
      %s464 = scalar_select %p463, %s25, 1
      %s465 = smul.addr %s464, 8
      %s466 = smul.addr %s465, 2
      %s467 = scalar_lea.vmem %s14, %s466
      %v468 = vld [vmem:[%s1] ss:$2 sm:$0x3]
      %s469 = scalar_lea.vmem %s1, 1
      %v470 = vld [vmem:[%s469] ss:$2 sm:$0x3]
      %v471 = vld [vmem:[%s462] sm:$0xff]
      %v472 = vld [vmem:[%s2] sm:$0xf]
      %v473 = vld [vmem:[%s3] sm:$0xf]
      %v475 = vcombine.high %v471, %v471
      %477 = vrot.lane.b32.xlu0 %v471, 17
      %v478 = vpop.permute.xlu0 %477
      %479 = vrot.lane.b32.xlu0 %v475, 17
      %v480 = vpop.permute.xlu0 %479
      %v481 = vlaneseq
      %v482 = vand.u32 %v481, 127
      %vm483 = vcmp.lt.s32.totalorder %v482, 17
      %v484 = vsel %vm483, %v478, %v480
      %v485 = vsel %vm483, %v480, %v478
      %vm486 = vcmp.ge.s32.totalorder %v468, 1
      %vm487 = vcmp.ge.s32.totalorder %v470, 1
      %vm488 = vmand %vm486, %vm487
      %v489 = vsel %vm488, 1, 0
      %v490 = vlaneseq
      %v491 = vshrl.u32 %v490, 7
      %v492 = vsub.s32 0, %v491
      %v493 = vrot.slane %v489, %v492
      %v494 = vlaneseq
      %v495 = vshrl.u32 %v494, 7
      %v496 = vsub.s32 1, %v495
      %v497 = vrot.slane %v489, %v496
      %vm498 = vcmp.eq.s32.totalorder %v493, 1
      %vm499 = vcmp.eq.s32.totalorder %v497, 1
      %v500 = vsel %vm498, %v485, 0.0
      %v501 = vsel %vm499, %v484, 0.0
      %502 = vst [vmem:[#allocation2] sm:$0xf] %v500
      %503 = vst [vmem:[#allocation2 + $0x8] sm:$0xf] %v501
      %504 = vrot.lane.b32.xlu0 %v471, 16
      %v505 = vpop.permute.xlu0 %504
      %506 = vrot.lane.b32.xlu0 %v475, 16
      %v507 = vpop.permute.xlu0 %506
      %vm508 = vcmp.lt.s32.totalorder %v482, 16
      %v509 = vsel %vm508, %v505, %v507
      %v510 = vsel %vm508, %v507, %v505
      %v511 = vsel %vm486, 1, 0
      %v512 = vlaneseq
      %v513 = vshrl.u32 %v512, 7
      %v514 = vsub.s32 0, %v513
      %v515 = vrot.slane %v511, %v514
      %v516 = vlaneseq
      %v517 = vshrl.u32 %v516, 7
      %v518 = vsub.s32 1, %v517
      %v519 = vrot.slane %v511, %v518
      %vm520 = vcmp.eq.s32.totalorder %v515, 1
      %vm521 = vcmp.eq.s32.totalorder %v519, 1
      %v522 = vsel %vm520, %v510, 0.0
      %v523 = vsel %vm521, %v509, 0.0
      %v526 = vrot.slane %v522, 4
      %v527 = vrot.slane %v523, 4
      %530 = vst [vmem:[#allocation2] sm:$0xf0] %v526
      %531 = vst [vmem:[#allocation2 + $0x8] sm:$0xf0] %v527
      %532 = vrot.lane.b32.xlu0 %v471, 15
      %v533 = vpop.permute.xlu0 %532
      %534 = vrot.lane.b32.xlu0 %v475, 15
      %v535 = vpop.permute.xlu0 %534
      %vm536 = vcmp.lt.s32.totalorder %v482, 15
      %v537 = vsel %vm536, %v533, %v535
      %v538 = vsel %vm536, %v535, %v533
      %vm539 = vcmp.lt.s32.totalorder %v470, 15
      %vm540 = vmand %vm486, %vm539
      %v541 = vsel %vm540, 1, 0
      %v542 = vlaneseq
      %v543 = vshrl.u32 %v542, 7
      %v544 = vsub.s32 0, %v543
      %v545 = vrot.slane %v541, %v544
      %v546 = vlaneseq
      %v547 = vshrl.u32 %v546, 7
      %v548 = vsub.s32 1, %v547
      %v549 = vrot.slane %v541, %v548
      %vm550 = vcmp.eq.s32.totalorder %v545, 1
      %vm551 = vcmp.eq.s32.totalorder %v549, 1
      %v552 = vsel %vm550, %v538, 0.0
      %v553 = vsel %vm551, %v537, 0.0
      %554 = vst [vmem:[#allocation2 + $0x10] sm:$0xf] %v552
      %555 = vst [vmem:[#allocation2 + $0x18] sm:$0xf] %v553
      %556 = vrot.lane.b32.xlu0 %v471, 1
      %v557 = vpop.permute.xlu0 %556
      %558 = vrot.lane.b32.xlu0 %v475, 1
      %v559 = vpop.permute.xlu0 %558
      %vm560 = vcmp.lt.s32.totalorder %v482, 1
      %v561 = vsel %vm560, %v557, %v559
      %v562 = vsel %vm560, %v559, %v557
      %v563 = vsel %vm487, 1, 0
      %v564 = vlaneseq
      %v565 = vshrl.u32 %v564, 7
      %v566 = vsub.s32 0, %v565
      %v567 = vrot.slane %v563, %v566
      %v568 = vlaneseq
      %v569 = vshrl.u32 %v568, 7
      %v570 = vsub.s32 1, %v569
      %v571 = vrot.slane %v563, %v570
      %vm572 = vcmp.eq.s32.totalorder %v567, 1
      %vm573 = vcmp.eq.s32.totalorder %v571, 1
      %v574 = vsel %vm572, %v562, 0.0
      %v575 = vsel %vm573, %v561, 0.0
      %v578 = vrot.slane %v574, 4
      %v579 = vrot.slane %v575, 4
      %582 = vst [vmem:[#allocation2 + $0x10] sm:$0xf0] %v578
      %583 = vst [vmem:[#allocation2 + $0x18] sm:$0xf0] %v579
      %584 = vst [vmem:[#allocation2 + $0x20] sm:$0xf] %v471
      %585 = vst [vmem:[#allocation2 + $0x28] sm:$0xf] %v475
      %586 = vrot.lane.b32.xlu0 %v471, 127
      %v587 = vpop.permute.xlu0 %586
      %588 = vrot.lane.b32.xlu0 %v475, 127
      %v589 = vpop.permute.xlu0 %588
      %vm590 = vcmp.lt.s32.totalorder %v482, 127
      %v591 = vsel %vm590, %v587, %v589
      %v592 = vsel %vm590, %v589, %v587
      %v593 = vsel %vm539, 1, 0
      %v594 = vlaneseq
      %v595 = vshrl.u32 %v594, 7
      %v596 = vsub.s32 0, %v595
      %v597 = vrot.slane %v593, %v596
      %v598 = vlaneseq
      %v599 = vshrl.u32 %v598, 7
      %v600 = vsub.s32 1, %v599
      %v601 = vrot.slane %v593, %v600
      %vm602 = vcmp.eq.s32.totalorder %v597, 1
      %vm603 = vcmp.eq.s32.totalorder %v601, 1
      %v604 = vsel %vm602, %v591, 0.0
      %v605 = vsel %vm603, %v592, 0.0
      %v608 = vrot.slane %v604, 4
      %v609 = vrot.slane %v605, 4
      %612 = vst [vmem:[#allocation2 + $0x20] sm:$0xf0] %v608
      %613 = vst [vmem:[#allocation2 + $0x28] sm:$0xf0] %v609
      %614 = vrot.lane.b32.xlu0 %v471, 113
      %v615 = vpop.permute.xlu0 %614
      %616 = vrot.lane.b32.xlu0 %v475, 113
      %v617 = vpop.permute.xlu0 %616
      %vm618 = vcmp.lt.s32.totalorder %v482, 113
      %v619 = vsel %vm618, %v615, %v617
      %v620 = vsel %vm618, %v617, %v615
      %vm621 = vcmp.lt.s32.totalorder %v468, 15
      %vm622 = vmand %vm621, %vm487
      %v623 = vsel %vm622, 1, 0
      %v624 = vlaneseq
      %v625 = vshrl.u32 %v624, 7
      %v626 = vsub.s32 0, %v625
      %v627 = vrot.slane %v623, %v626
      %v628 = vlaneseq
      %v629 = vshrl.u32 %v628, 7
      %v630 = vsub.s32 1, %v629
      %v631 = vrot.slane %v623, %v630
      %vm632 = vcmp.eq.s32.totalorder %v627, 1
      %vm633 = vcmp.eq.s32.totalorder %v631, 1
      %v634 = vsel %vm632, %v619, 0.0
      %v635 = vsel %vm633, %v620, 0.0
      %636 = vst [vmem:[#allocation2 + $0x30] sm:$0xf] %v634
      %637 = vst [vmem:[#allocation2 + $0x38] sm:$0xf] %v635
      %638 = vrot.lane.b32.xlu0 %v471, 112
      %v639 = vpop.permute.xlu0 %638
      %640 = vrot.lane.b32.xlu0 %v475, 112
      %v641 = vpop.permute.xlu0 %640
      %vm642 = vcmp.lt.s32.totalorder %v482, 112
      %v643 = vsel %vm642, %v639, %v641
      %v644 = vsel %vm642, %v641, %v639
      %v645 = vsel %vm621, 1, 0
      %v646 = vlaneseq
      %v647 = vshrl.u32 %v646, 7
      %v648 = vsub.s32 0, %v647
      %v649 = vrot.slane %v645, %v648
      %v650 = vlaneseq
      %v651 = vshrl.u32 %v650, 7
      %v652 = vsub.s32 1, %v651
      %v653 = vrot.slane %v645, %v652
      %vm654 = vcmp.eq.s32.totalorder %v649, 1
      %vm655 = vcmp.eq.s32.totalorder %v653, 1
      %v656 = vsel %vm654, %v643, 0.0
      %v657 = vsel %vm655, %v644, 0.0
      %v660 = vrot.slane %v656, 4
      %v661 = vrot.slane %v657, 4
      %664 = vst [vmem:[#allocation2 + $0x30] sm:$0xf0] %v660
      %665 = vst [vmem:[#allocation2 + $0x38] sm:$0xf0] %v661
      %666 = vrot.lane.b32.xlu0 %v471, 111
      %v667 = vpop.permute.xlu0 %666
      %668 = vrot.lane.b32.xlu0 %v475, 111
      %v669 = vpop.permute.xlu0 %668
      %vm670 = vcmp.lt.s32.totalorder %v482, 111
      %v671 = vsel %vm670, %v667, %v669
      %v672 = vsel %vm670, %v669, %v667
      %vm673 = vmand %vm621, %vm539
      %v674 = vsel %vm673, 1, 0
      %v675 = vlaneseq
      %v676 = vshrl.u32 %v675, 7
      %v677 = vsub.s32 0, %v676
      %v678 = vrot.slane %v674, %v677
      %v679 = vlaneseq
      %v680 = vshrl.u32 %v679, 7
      %v681 = vsub.s32 1, %v680
      %v682 = vrot.slane %v674, %v681
      %vm683 = vcmp.eq.s32.totalorder %v678, 1
      %vm684 = vcmp.eq.s32.totalorder %v682, 1
      %v685 = vsel %vm683, %v671, 0.0
      %v686 = vsel %vm684, %v672, 0.0
      %687 = vst [vmem:[#allocation2 + $0x40] sm:$0xf] %v685
      %688 = vst [vmem:[#allocation2 + $0x48] sm:$0xf] %v686
      %v689 = vld [vmem:[#allocation2] sm:$0xff]
      %v690 = vld [vmem:[#allocation2 + $0x8] sm:$0xff]
      %v691 = vld [vmem:[#allocation2 + $0x10] sm:$0xff]
      %v692 = vld [vmem:[#allocation2 + $0x18] sm:$0xff]
      %v693 = vld [vmem:[#allocation2 + $0x20] sm:$0xff]
      %v694 = vld [vmem:[#allocation2 + $0x28] sm:$0xff]
      %v695 = vld [vmem:[#allocation2 + $0x30] sm:$0xff]
      %v696 = vld [vmem:[#allocation2 + $0x38] sm:$0xff]
      %v697 = vld [vmem:[#allocation2 + $0x40] sm:$0xf]
      %v698 = vld [vmem:[#allocation2 + $0x48] sm:$0xf]
      %700 = vset.pattern.permute.xlu0 0
      %701 = vperm.xlu0 %700, %v473
      %v702 = vpop.permute.xlu0 %701
      %vm704 = vcmask 293888
      %v706 = vsel %vm704, %v472, 0
      %vm708 = vcmask 1043456
      %v710 = vsel %vm708, %v697, 0
      %v713 = vsel %vm708, %v698, 0
      %715 = vmatprep.subr.mxu0 %v690
      %716 = vmatpush1.msra.mxu0 %v689
      %717 = vmatprep.subr.mxu0 %v692
      %718 = vmatpush1.msra.mxu0 %v691
      %719 = vmatprep.subr.mxu0 %v694
      %720 = vmatpush1.msra.mxu0 %v693
      %721 = vmatprep.subr.mxu0 %v696
      %722 = vmatpush1.msra.mxu0 %v695
      %723 = vmatprep.subr.mxu0 %v713
      %724 = vmatpush1.msra.mxu0 %v710
      %725 = vmatprep.subr.mxu0 0.0
      %726 = vmatpush1.msra.mxu0 0.0
      %727 = vmatprep.subr.mxu0 0.0
      %728 = vmatpush1.msra.mxu0 0.0
      %729 = vmatprep.subr.mxu0 0.0
      %730 = vmatpush1.msra.mxu0 0.0
      %731 = vmatprep.subr.mxu0 0.0
      %732 = vmatpush1.msra.mxu0 0.0
      %733 = vmatprep.subr.mxu0 0.0
      %734 = vmatpush1.msra.mxu0 0.0
      %735 = vmatprep.subr.mxu0 0.0
      %736 = vmatpush1.msra.mxu0 0.0
      %737 = vmatprep.subr.mxu0 0.0
      %738 = vmatpush1.msra.mxu0 0.0
      %739 = vmatprep.subr.mxu0 0.0
      %740 = vmatpush1.msra.mxu0 0.0
      %741 = vmatprep.subr.mxu0 0.0
      %742 = vmatpush1.msra.mxu0 0.0
      %743 = vmatprep.subr.mxu0 0.0
      %744 = vmatpush1.msra.mxu0 0.0
      %745 = vmatprep.subr.mxu0 0.0
      %746 = vmatpush1.msra.mxu0 0.0
      %747 = vmatprep.subr.mxu0 0.0
      %748 = vmatpush1.msra.mxu0 0.0
      %749 = vmatprep.subr.mxu0 0.0
      %750 = vmatpush1.msra.mxu0 0.0
      %751 = vmatprep.subr.mxu0 0.0
      %752 = vmatpush1.msra.mxu0 0.0
      %753 = vmatprep.subr.mxu0 0.0
      %754 = vmatpush1.msra.mxu0 0.0
      %755 = vmatprep.subr.mxu0 0.0
      %756 = vmatpush1.msra.mxu0 0.0
      %757 = vmatprep.subr.mxu0 0.0
      %758 = vmatpush1.msra.mxu0 0.0
      %759 = vmatprep.subr.mxu0 0.0
      %760 = vmatpush1.msra.mxu0 0.0
      %761 = vmatprep.subr.mxu0 0.0
      %762 = vmatpush1.msra.mxu0 0.0
      %763 = vmatprep.subr.mxu0 0.0
      %764 = vmatpush1.msra.mxu0 0.0
      %765 = vmatprep.subr.mxu0 0.0
      %766 = vmatpush1.msra.mxu0 0.0
      %767 = vmatprep.subr.mxu0 0.0
      %768 = vmatpush1.msra.mxu0 0.0
      %769 = vmatprep.subr.mxu0 0.0
      %770 = vmatpush1.msra.mxu0 0.0
      %771 = vmatprep.subr.mxu0 0.0
      %772 = vmatpush1.msra.mxu0 0.0
      %773 = vmatprep.subr.mxu0 0.0
      %774 = vmatpush1.msra.mxu0 0.0
      %775 = vmatprep.subr.mxu0 0.0
      %776 = vmatpush1.msra.mxu0 0.0
      %777 = vmatprep.subr.mxu0 0.0
      %778 = vmatpush1.msra.mxu0 0.0
      %779 = vmatprep.mubr.f32.mxu0 0.0
      %780 = vmatmul.mubr.f32.gmra.mrb[0].mxu0 %v706
      %v781 = vpop.f32.mrb[0].mxu0
      %v782 = vadd.f32 %v702, %v781
      %v783 = vpop.f32.mrb[0].mxu0
      %v784 = vadd.f32 %v702, %v783
      %785 = vdwg.mxu0
      %v786 = vmax.f32 %v782, 0.0
      %v787 = vmax.f32 %v784, 0.0
      %v788 = vmin.f32 %v786, 6.0
      %v789 = vmin.f32 %v787, 6.0
      %v790 = vld [vmem:[%s5] sm:$0xf]
      %v791 = vld [vmem:[%s6] sm:$0xf]
      %792 = vst [vmem:[#allocation2] sm:$0xf] %v500
      %793 = vst [vmem:[#allocation2 + $0x8] sm:$0xf] %v501
      %794 = vst [vmem:[#allocation2] sm:$0xf0] %v526
      %795 = vst [vmem:[#allocation2 + $0x8] sm:$0xf0] %v527
      %796 = vst [vmem:[#allocation2 + $0x10] sm:$0xf] %v552
      %797 = vst [vmem:[#allocation2 + $0x18] sm:$0xf] %v553
      %798 = vst [vmem:[#allocation2 + $0x10] sm:$0xf0] %v578
      %799 = vst [vmem:[#allocation2 + $0x18] sm:$0xf0] %v579
      %800 = vst [vmem:[#allocation2 + $0x20] sm:$0xf] %v471
      %801 = vst [vmem:[#allocation2 + $0x28] sm:$0xf] %v475
      %802 = vst [vmem:[#allocation2 + $0x20] sm:$0xf0] %v608
      %803 = vst [vmem:[#allocation2 + $0x28] sm:$0xf0] %v609
      %804 = vst [vmem:[#allocation2 + $0x30] sm:$0xf] %v634
      %805 = vst [vmem:[#allocation2 + $0x38] sm:$0xf] %v635
      %806 = vst [vmem:[#allocation2 + $0x30] sm:$0xf0] %v660
      %807 = vst [vmem:[#allocation2 + $0x38] sm:$0xf0] %v661
      %808 = vst [vmem:[#allocation2 + $0x40] sm:$0xf] %v685
      %809 = vst [vmem:[#allocation2 + $0x48] sm:$0xf] %v686
      %v810 = vld [vmem:[#allocation2] sm:$0xff]
      %v811 = vld [vmem:[#allocation2 + $0x8] sm:$0xff]
      %v812 = vld [vmem:[#allocation2 + $0x10] sm:$0xff]
      %v813 = vld [vmem:[#allocation2 + $0x18] sm:$0xff]
      %v814 = vld [vmem:[#allocation2 + $0x20] sm:$0xff]
      %v815 = vld [vmem:[#allocation2 + $0x28] sm:$0xff]
      %v816 = vld [vmem:[#allocation2 + $0x30] sm:$0xff]
      %v817 = vld [vmem:[#allocation2 + $0x38] sm:$0xff]
      %v818 = vld [vmem:[#allocation2 + $0x40] sm:$0xf]
      %v819 = vld [vmem:[#allocation2 + $0x48] sm:$0xf]
      %821 = vset.pattern.permute.xlu0 0
      %822 = vperm.xlu0 %821, %v791
      %v823 = vpop.permute.xlu0 %822
      %v826 = vsel %vm704, %v790, 0
      %v829 = vsel %vm708, %v818, 0
      %v832 = vsel %vm708, %v819, 0
      %834 = vmatprep.subr.mxu0 %v811
      %835 = vmatpush1.msra.mxu0 %v810
      %836 = vmatprep.subr.mxu0 %v813
      %837 = vmatpush1.msra.mxu0 %v812
      %838 = vmatprep.subr.mxu0 %v815
      %839 = vmatpush1.msra.mxu0 %v814
      %840 = vmatprep.subr.mxu0 %v817
      %841 = vmatpush1.msra.mxu0 %v816
      %842 = vmatprep.subr.mxu0 %v832
      %843 = vmatpush1.msra.mxu0 %v829
      %844 = vmatprep.subr.mxu0 0.0
      %845 = vmatpush1.msra.mxu0 0.0
      %846 = vmatprep.subr.mxu0 0.0
      %847 = vmatpush1.msra.mxu0 0.0
      %848 = vmatprep.subr.mxu0 0.0
      %849 = vmatpush1.msra.mxu0 0.0
      %850 = vmatprep.subr.mxu0 0.0
      %851 = vmatpush1.msra.mxu0 0.0
      %852 = vmatprep.subr.mxu0 0.0
      %853 = vmatpush1.msra.mxu0 0.0
      %854 = vmatprep.subr.mxu0 0.0
      %855 = vmatpush1.msra.mxu0 0.0
      %856 = vmatprep.subr.mxu0 0.0
      %857 = vmatpush1.msra.mxu0 0.0
      %858 = vmatprep.subr.mxu0 0.0
      %859 = vmatpush1.msra.mxu0 0.0
      %860 = vmatprep.subr.mxu0 0.0
      %861 = vmatpush1.msra.mxu0 0.0
      %862 = vmatprep.subr.mxu0 0.0
      %863 = vmatpush1.msra.mxu0 0.0
      %864 = vmatprep.subr.mxu0 0.0
      %865 = vmatpush1.msra.mxu0 0.0
      %866 = vmatprep.subr.mxu0 0.0
      %867 = vmatpush1.msra.mxu0 0.0
      %868 = vmatprep.subr.mxu0 0.0
      %869 = vmatpush1.msra.mxu0 0.0
      %870 = vmatprep.subr.mxu0 0.0
      %871 = vmatpush1.msra.mxu0 0.0
      %872 = vmatprep.subr.mxu0 0.0
      %873 = vmatpush1.msra.mxu0 0.0
      %874 = vmatprep.subr.mxu0 0.0
      %875 = vmatpush1.msra.mxu0 0.0
      %876 = vmatprep.subr.mxu0 0.0
      %877 = vmatpush1.msra.mxu0 0.0
      %878 = vmatprep.subr.mxu0 0.0
      %879 = vmatpush1.msra.mxu0 0.0
      %880 = vmatprep.subr.mxu0 0.0
      %881 = vmatpush1.msra.mxu0 0.0
      %882 = vmatprep.subr.mxu0 0.0
      %883 = vmatpush1.msra.mxu0 0.0
      %884 = vmatprep.subr.mxu0 0.0
      %885 = vmatpush1.msra.mxu0 0.0
      %886 = vmatprep.subr.mxu0 0.0
      %887 = vmatpush1.msra.mxu0 0.0
      %888 = vmatprep.subr.mxu0 0.0
      %889 = vmatpush1.msra.mxu0 0.0
      %890 = vmatprep.subr.mxu0 0.0
      %891 = vmatpush1.msra.mxu0 0.0
      %892 = vmatprep.subr.mxu0 0.0
      %893 = vmatpush1.msra.mxu0 0.0
      %894 = vmatprep.subr.mxu0 0.0
      %895 = vmatpush1.msra.mxu0 0.0
      %896 = vmatprep.subr.mxu0 0.0
      %897 = vmatpush1.msra.mxu0 0.0
      %898 = vmatprep.mubr.f32.mxu0 0.0
      %899 = vmatmul.mubr.f32.gmra.mrb[0].mxu0 %v826
      %v900 = vpop.f32.mrb[0].mxu0
      %v901 = vadd.f32 %v823, %v900
      %v902 = vpop.f32.mrb[0].mxu0
      %v903 = vadd.f32 %v823, %v902
      %904 = vdwg.mxu0
      %v905 = vmax.f32 %v901, 0.0
      %v906 = vmax.f32 %v903, 0.0
      %v907 = vmin.f32 %v905, 6.0
      %v908 = vmin.f32 %v906, 6.0
      %v909 = vld [vmem:[%s8] sm:$0xf]
      %v910 = vld [vmem:[%s9] sm:$0xf]
      %911 = vrot.lane.b32.xlu0 %v907, 17
      %v912 = vpop.permute.xlu0 %911
      %913 = vrot.lane.b32.xlu0 %v908, 17
      %v914 = vpop.permute.xlu0 %913
      %v915 = vsel %vm483, %v912, %v914
      %v916 = vsel %vm483, %v914, %v912
      %v917 = vsel %vm498, %v916, 0.0
      %v918 = vsel %vm499, %v915, 0.0
      %919 = vst [vmem:[#allocation2] sm:$0xf] %v917
      %920 = vst [vmem:[#allocation2 + $0x8] sm:$0xf] %v918
      %921 = vrot.lane.b32.xlu0 %v907, 16
      %v922 = vpop.permute.xlu0 %921
      %923 = vrot.lane.b32.xlu0 %v908, 16
      %v924 = vpop.permute.xlu0 %923
      %v925 = vsel %vm508, %v922, %v924
      %v926 = vsel %vm508, %v924, %v922
      %v927 = vsel %vm520, %v926, 0.0
      %v928 = vsel %vm521, %v925, 0.0
      %v931 = vrot.slane %v927, 4
      %v932 = vrot.slane %v928, 4
      %935 = vst [vmem:[#allocation2] sm:$0xf0] %v931
      %936 = vst [vmem:[#allocation2 + $0x8] sm:$0xf0] %v932
      %937 = vrot.lane.b32.xlu0 %v907, 15
      %v938 = vpop.permute.xlu0 %937
      %939 = vrot.lane.b32.xlu0 %v908, 15
      %v940 = vpop.permute.xlu0 %939
      %v941 = vsel %vm536, %v938, %v940
      %v942 = vsel %vm536, %v940, %v938
      %v943 = vsel %vm550, %v942, 0.0
      %v944 = vsel %vm551, %v941, 0.0
      %945 = vst [vmem:[#allocation2 + $0x10] sm:$0xf] %v943
      %946 = vst [vmem:[#allocation2 + $0x18] sm:$0xf] %v944
      %947 = vrot.lane.b32.xlu0 %v907, 1
      %v948 = vpop.permute.xlu0 %947
      %949 = vrot.lane.b32.xlu0 %v908, 1
      %v950 = vpop.permute.xlu0 %949
      %v951 = vsel %vm560, %v948, %v950
      %v952 = vsel %vm560, %v950, %v948
      %v953 = vsel %vm572, %v952, 0.0
      %v954 = vsel %vm573, %v951, 0.0
      %v957 = vrot.slane %v953, 4
      %v958 = vrot.slane %v954, 4
      %961 = vst [vmem:[#allocation2 + $0x10] sm:$0xf0] %v957
      %962 = vst [vmem:[#allocation2 + $0x18] sm:$0xf0] %v958
      %963 = vst [vmem:[#allocation2 + $0x20] sm:$0xf] %v907
      %964 = vst [vmem:[#allocation2 + $0x28] sm:$0xf] %v908
      %965 = vrot.lane.b32.xlu0 %v907, 127
      %v966 = vpop.permute.xlu0 %965
      %967 = vrot.lane.b32.xlu0 %v908, 127
      %v968 = vpop.permute.xlu0 %967
      %v969 = vsel %vm590, %v966, %v968
      %v970 = vsel %vm590, %v968, %v966
      %v971 = vsel %vm602, %v969, 0.0
      %v972 = vsel %vm603, %v970, 0.0
      %v975 = vrot.slane %v971, 4
      %v976 = vrot.slane %v972, 4
      %979 = vst [vmem:[#allocation2 + $0x20] sm:$0xf0] %v975
      %980 = vst [vmem:[#allocation2 + $0x28] sm:$0xf0] %v976
      %981 = vrot.lane.b32.xlu0 %v907, 113
      %v982 = vpop.permute.xlu0 %981
      %983 = vrot.lane.b32.xlu0 %v908, 113
      %v984 = vpop.permute.xlu0 %983
      %v985 = vsel %vm618, %v982, %v984
      %v986 = vsel %vm618, %v984, %v982
      %v987 = vsel %vm632, %v985, 0.0
      %v988 = vsel %vm633, %v986, 0.0
      %989 = vst [vmem:[#allocation2 + $0x30] sm:$0xf] %v987
      %990 = vst [vmem:[#allocation2 + $0x38] sm:$0xf] %v988
      %991 = vrot.lane.b32.xlu0 %v907, 112
      %v992 = vpop.permute.xlu0 %991
      %993 = vrot.lane.b32.xlu0 %v908, 112
      %v994 = vpop.permute.xlu0 %993
      %v995 = vsel %vm642, %v992, %v994
      %v996 = vsel %vm642, %v994, %v992
      %v997 = vsel %vm654, %v995, 0.0
      %v998 = vsel %vm655, %v996, 0.0
      %v1001 = vrot.slane %v997, 4
      %v1002 = vrot.slane %v998, 4
      %1005 = vst [vmem:[#allocation2 + $0x30] sm:$0xf0] %v1001
      %1006 = vst [vmem:[#allocation2 + $0x38] sm:$0xf0] %v1002
      %1007 = vrot.lane.b32.xlu0 %v907, 111
      %v1008 = vpop.permute.xlu0 %1007
      %1009 = vrot.lane.b32.xlu0 %v908, 111
      %v1010 = vpop.permute.xlu0 %1009
      %v1011 = vsel %vm670, %v1008, %v1010
      %v1012 = vsel %vm670, %v1010, %v1008
      %v1013 = vsel %vm683, %v1011, 0.0
      %v1014 = vsel %vm684, %v1012, 0.0
      %1015 = vst [vmem:[#allocation2 + $0x40] sm:$0xf] %v1013
      %1016 = vst [vmem:[#allocation2 + $0x48] sm:$0xf] %v1014
      %v1017 = vld [vmem:[#allocation2] sm:$0xff]
      %v1018 = vld [vmem:[#allocation2 + $0x8] sm:$0xff]
      %v1019 = vld [vmem:[#allocation2 + $0x10] sm:$0xff]
      %v1020 = vld [vmem:[#allocation2 + $0x18] sm:$0xff]
      %v1021 = vld [vmem:[#allocation2 + $0x20] sm:$0xff]
      %v1022 = vld [vmem:[#allocation2 + $0x28] sm:$0xff]
      %v1023 = vld [vmem:[#allocation2 + $0x30] sm:$0xff]
      %v1024 = vld [vmem:[#allocation2 + $0x38] sm:$0xff]
      %v1025 = vld [vmem:[#allocation2 + $0x40] sm:$0xf]
      %v1026 = vld [vmem:[#allocation2 + $0x48] sm:$0xf]
      %1028 = vset.pattern.permute.xlu0 0
      %1029 = vperm.xlu0 %1028, %v910
      %v1030 = vpop.permute.xlu0 %1029
      %v1033 = vsel %vm704, %v909, 0
      %v1036 = vsel %vm708, %v1025, 0
      %v1039 = vsel %vm708, %v1026, 0
      %1041 = vmatprep.subr.mxu0 %v1018
      %1042 = vmatpush1.msra.mxu0 %v1017
      %1043 = vmatprep.subr.mxu0 %v1020
      %1044 = vmatpush1.msra.mxu0 %v1019
      %1045 = vmatprep.subr.mxu0 %v1022
      %1046 = vmatpush1.msra.mxu0 %v1021
      %1047 = vmatprep.subr.mxu0 %v1024
      %1048 = vmatpush1.msra.mxu0 %v1023
      %1049 = vmatprep.subr.mxu0 %v1039
      %1050 = vmatpush1.msra.mxu0 %v1036
      %1051 = vmatprep.subr.mxu0 0.0
      %1052 = vmatpush1.msra.mxu0 0.0
      %1053 = vmatprep.subr.mxu0 0.0
      %1054 = vmatpush1.msra.mxu0 0.0
      %1055 = vmatprep.subr.mxu0 0.0
      %1056 = vmatpush1.msra.mxu0 0.0
      %1057 = vmatprep.subr.mxu0 0.0
      %1058 = vmatpush1.msra.mxu0 0.0
      %1059 = vmatprep.subr.mxu0 0.0
      %1060 = vmatpush1.msra.mxu0 0.0
      %1061 = vmatprep.subr.mxu0 0.0
      %1062 = vmatpush1.msra.mxu0 0.0
      %1063 = vmatprep.subr.mxu0 0.0
      %1064 = vmatpush1.msra.mxu0 0.0
      %1065 = vmatprep.subr.mxu0 0.0
      %1066 = vmatpush1.msra.mxu0 0.0
      %1067 = vmatprep.subr.mxu0 0.0
      %1068 = vmatpush1.msra.mxu0 0.0
      %1069 = vmatprep.subr.mxu0 0.0
      %1070 = vmatpush1.msra.mxu0 0.0
      %1071 = vmatprep.subr.mxu0 0.0
      %1072 = vmatpush1.msra.mxu0 0.0
      %1073 = vmatprep.subr.mxu0 0.0
      %1074 = vmatpush1.msra.mxu0 0.0
      %1075 = vmatprep.subr.mxu0 0.0
      %1076 = vmatpush1.msra.mxu0 0.0
      %1077 = vmatprep.subr.mxu0 0.0
      %1078 = vmatpush1.msra.mxu0 0.0
      %1079 = vmatprep.subr.mxu0 0.0
      %1080 = vmatpush1.msra.mxu0 0.0
      %1081 = vmatprep.subr.mxu0 0.0
      %1082 = vmatpush1.msra.mxu0 0.0
      %1083 = vmatprep.subr.mxu0 0.0
      %1084 = vmatpush1.msra.mxu0 0.0
      %1085 = vmatprep.subr.mxu0 0.0
      %1086 = vmatpush1.msra.mxu0 0.0
      %1087 = vmatprep.subr.mxu0 0.0
      %1088 = vmatpush1.msra.mxu0 0.0
      %1089 = vmatprep.subr.mxu0 0.0
      %1090 = vmatpush1.msra.mxu0 0.0
      %1091 = vmatprep.subr.mxu0 0.0
      %1092 = vmatpush1.msra.mxu0 0.0
      %1093 = vmatprep.subr.mxu0 0.0
      %1094 = vmatpush1.msra.mxu0 0.0
      %1095 = vmatprep.subr.mxu0 0.0
      %1096 = vmatpush1.msra.mxu0 0.0
      %1097 = vmatprep.subr.mxu0 0.0
      %1098 = vmatpush1.msra.mxu0 0.0
      %1099 = vmatprep.subr.mxu0 0.0
      %1100 = vmatpush1.msra.mxu0 0.0
      %1101 = vmatprep.subr.mxu0 0.0
      %1102 = vmatpush1.msra.mxu0 0.0
      %1103 = vmatprep.subr.mxu0 0.0
      %1104 = vmatpush1.msra.mxu0 0.0
      %1105 = vmatprep.mubr.f32.mxu0 0.0
      %1106 = vmatmul.mubr.f32.gmra.mrb[0].mxu0 %v1033
      %v1107 = vpop.f32.mrb[0].mxu0
      %v1108 = vadd.f32 %v1030, %v1107
      %v1109 = vpop.f32.mrb[0].mxu0
      %v1110 = vadd.f32 %v1030, %v1109
      %1111 = vdwg.mxu0
      %v1112 = vmax.f32 %v1108, 0.0
      %v1113 = vmax.f32 %v1110, 0.0
      %v1114 = vmin.f32 %v1112, 6.0
      %v1115 = vmin.f32 %v1113, 6.0
      %v1116 = vld [vmem:[%s11] sm:$0xf]
      %v1117 = vld [vmem:[%s12] sm:$0xf]
      %1118 = vrot.lane.b32.xlu0 %v1114, 17
      %v1119 = vpop.permute.xlu0 %1118
      %1120 = vrot.lane.b32.xlu0 %v1115, 17
      %v1121 = vpop.permute.xlu0 %1120
      %v1122 = vsel %vm483, %v1119, %v1121
      %v1123 = vsel %vm483, %v1121, %v1119
      %v1124 = vsel %vm498, %v1123, 0.0
      %v1125 = vsel %vm499, %v1122, 0.0
      %1126 = vst [vmem:[#allocation2] sm:$0xf] %v1124
      %1127 = vst [vmem:[#allocation2 + $0x8] sm:$0xf] %v1125
      %1128 = vrot.lane.b32.xlu0 %v1114, 16
      %v1129 = vpop.permute.xlu0 %1128
      %1130 = vrot.lane.b32.xlu0 %v1115, 16
      %v1131 = vpop.permute.xlu0 %1130
      %v1132 = vsel %vm508, %v1129, %v1131
      %v1133 = vsel %vm508, %v1131, %v1129
      %v1134 = vsel %vm520, %v1133, 0.0
      %v1135 = vsel %vm521, %v1132, 0.0
      %v1138 = vrot.slane %v1134, 4
      %v1139 = vrot.slane %v1135, 4
      %1142 = vst [vmem:[#allocation2] sm:$0xf0] %v1138
      %1143 = vst [vmem:[#allocation2 + $0x8] sm:$0xf0] %v1139
      %1144 = vrot.lane.b32.xlu0 %v1114, 15
      %v1145 = vpop.permute.xlu0 %1144
      %1146 = vrot.lane.b32.xlu0 %v1115, 15
      %v1147 = vpop.permute.xlu0 %1146
      %v1148 = vsel %vm536, %v1145, %v1147
      %v1149 = vsel %vm536, %v1147, %v1145
      %v1150 = vsel %vm550, %v1149, 0.0
      %v1151 = vsel %vm551, %v1148, 0.0
      %1152 = vst [vmem:[#allocation2 + $0x10] sm:$0xf] %v1150
      %1153 = vst [vmem:[#allocation2 + $0x18] sm:$0xf] %v1151
      %1154 = vrot.lane.b32.xlu0 %v1114, 1
      %v1155 = vpop.permute.xlu0 %1154
      %1156 = vrot.lane.b32.xlu0 %v1115, 1
      %v1157 = vpop.permute.xlu0 %1156
      %v1158 = vsel %vm560, %v1155, %v1157
      %v1159 = vsel %vm560, %v1157, %v1155
      %v1160 = vsel %vm572, %v1159, 0.0
      %v1161 = vsel %vm573, %v1158, 0.0
      %v1164 = vrot.slane %v1160, 4
      %v1165 = vrot.slane %v1161, 4
      %1168 = vst [vmem:[#allocation2 + $0x10] sm:$0xf0] %v1164
      %1169 = vst [vmem:[#allocation2 + $0x18] sm:$0xf0] %v1165
      %1170 = vst [vmem:[#allocation2 + $0x20] sm:$0xf] %v1114
      %1171 = vst [vmem:[#allocation2 + $0x28] sm:$0xf] %v1115
      %1172 = vrot.lane.b32.xlu0 %v1114, 127
      %v1173 = vpop.permute.xlu0 %1172
      %1174 = vrot.lane.b32.xlu0 %v1115, 127
      %v1175 = vpop.permute.xlu0 %1174
      %v1176 = vsel %vm590, %v1173, %v1175
      %v1177 = vsel %vm590, %v1175, %v1173
      %v1178 = vsel %vm602, %v1176, 0.0
      %v1179 = vsel %vm603, %v1177, 0.0
      %v1182 = vrot.slane %v1178, 4
      %v1183 = vrot.slane %v1179, 4
      %1186 = vst [vmem:[#allocation2 + $0x20] sm:$0xf0] %v1182
      %1187 = vst [vmem:[#allocation2 + $0x28] sm:$0xf0] %v1183
      %1188 = vrot.lane.b32.xlu0 %v1114, 113
      %v1189 = vpop.permute.xlu0 %1188
      %1190 = vrot.lane.b32.xlu0 %v1115, 113
      %v1191 = vpop.permute.xlu0 %1190
      %v1192 = vsel %vm618, %v1189, %v1191
      %v1193 = vsel %vm618, %v1191, %v1189
      %v1194 = vsel %vm632, %v1192, 0.0
      %v1195 = vsel %vm633, %v1193, 0.0
      %1196 = vst [vmem:[#allocation2 + $0x30] sm:$0xf] %v1194
      %1197 = vst [vmem:[#allocation2 + $0x38] sm:$0xf] %v1195
      %1198 = vrot.lane.b32.xlu0 %v1114, 112
      %v1199 = vpop.permute.xlu0 %1198
      %1200 = vrot.lane.b32.xlu0 %v1115, 112
      %v1201 = vpop.permute.xlu0 %1200
      %v1202 = vsel %vm642, %v1199, %v1201
      %v1203 = vsel %vm642, %v1201, %v1199
      %v1204 = vsel %vm654, %v1202, 0.0
      %v1205 = vsel %vm655, %v1203, 0.0
      %v1208 = vrot.slane %v1204, 4
      %v1209 = vrot.slane %v1205, 4
      %1212 = vst [vmem:[#allocation2 + $0x30] sm:$0xf0] %v1208
      %1213 = vst [vmem:[#allocation2 + $0x38] sm:$0xf0] %v1209
      %1214 = vrot.lane.b32.xlu0 %v1114, 111
      %v1215 = vpop.permute.xlu0 %1214
      %1216 = vrot.lane.b32.xlu0 %v1115, 111
      %v1217 = vpop.permute.xlu0 %1216
      %v1218 = vsel %vm670, %v1215, %v1217
      %v1219 = vsel %vm670, %v1217, %v1215
      %v1220 = vsel %vm683, %v1218, 0.0
      %v1221 = vsel %vm684, %v1219, 0.0
      %1222 = vst [vmem:[#allocation2 + $0x40] sm:$0xf] %v1220
      %1223 = vst [vmem:[#allocation2 + $0x48] sm:$0xf] %v1221
      %v1224 = vld [vmem:[#allocation2] sm:$0xff]
      %v1225 = vld [vmem:[#allocation2 + $0x8] sm:$0xff]
      %v1226 = vld [vmem:[#allocation2 + $0x10] sm:$0xff]
      %v1227 = vld [vmem:[#allocation2 + $0x18] sm:$0xff]
      %v1228 = vld [vmem:[#allocation2 + $0x20] sm:$0xff]
      %v1229 = vld [vmem:[#allocation2 + $0x28] sm:$0xff]
      %v1230 = vld [vmem:[#allocation2 + $0x30] sm:$0xff]
      %v1231 = vld [vmem:[#allocation2 + $0x38] sm:$0xff]
      %v1232 = vld [vmem:[#allocation2 + $0x40] sm:$0xf]
      %v1233 = vld [vmem:[#allocation2 + $0x48] sm:$0xf]
      %1235 = vset.pattern.permute.xlu0 0
      %1236 = vperm.xlu0 %1235, %v1117
      %v1237 = vpop.permute.xlu0 %1236
      %v1240 = vsel %vm704, %v1116, 0
      %v1243 = vsel %vm708, %v1232, 0
      %v1246 = vsel %vm708, %v1233, 0
      %1248 = vmatprep.subr.mxu0 %v1225
      %1249 = vmatpush1.msra.mxu0 %v1224
      %1250 = vmatprep.subr.mxu0 %v1227
      %1251 = vmatpush1.msra.mxu0 %v1226
      %1252 = vmatprep.subr.mxu0 %v1229
      %1253 = vmatpush1.msra.mxu0 %v1228
      %1254 = vmatprep.subr.mxu0 %v1231
      %1255 = vmatpush1.msra.mxu0 %v1230
      %1256 = vmatprep.subr.mxu0 %v1246
      %1257 = vmatpush1.msra.mxu0 %v1243
      %1258 = vmatprep.subr.mxu0 0.0
      %1259 = vmatpush1.msra.mxu0 0.0
      %1260 = vmatprep.subr.mxu0 0.0
      %1261 = vmatpush1.msra.mxu0 0.0
      %1262 = vmatprep.subr.mxu0 0.0
      %1263 = vmatpush1.msra.mxu0 0.0
      %1264 = vmatprep.subr.mxu0 0.0
      %1265 = vmatpush1.msra.mxu0 0.0
      %1266 = vmatprep.subr.mxu0 0.0
      %1267 = vmatpush1.msra.mxu0 0.0
      %1268 = vmatprep.subr.mxu0 0.0
      %1269 = vmatpush1.msra.mxu0 0.0
      %1270 = vmatprep.subr.mxu0 0.0
      %1271 = vmatpush1.msra.mxu0 0.0
      %1272 = vmatprep.subr.mxu0 0.0
      %1273 = vmatpush1.msra.mxu0 0.0
      %1274 = vmatprep.subr.mxu0 0.0
      %1275 = vmatpush1.msra.mxu0 0.0
      %1276 = vmatprep.subr.mxu0 0.0
      %1277 = vmatpush1.msra.mxu0 0.0
      %1278 = vmatprep.subr.mxu0 0.0
      %1279 = vmatpush1.msra.mxu0 0.0
      %1280 = vmatprep.subr.mxu0 0.0
      %1281 = vmatpush1.msra.mxu0 0.0
      %1282 = vmatprep.subr.mxu0 0.0
      %1283 = vmatpush1.msra.mxu0 0.0
      %1284 = vmatprep.subr.mxu0 0.0
      %1285 = vmatpush1.msra.mxu0 0.0
      %1286 = vmatprep.subr.mxu0 0.0
      %1287 = vmatpush1.msra.mxu0 0.0
      %1288 = vmatprep.subr.mxu0 0.0
      %1289 = vmatpush1.msra.mxu0 0.0
      %1290 = vmatprep.subr.mxu0 0.0
      %1291 = vmatpush1.msra.mxu0 0.0
      %1292 = vmatprep.subr.mxu0 0.0
      %1293 = vmatpush1.msra.mxu0 0.0
      %1294 = vmatprep.subr.mxu0 0.0
      %1295 = vmatpush1.msra.mxu0 0.0
      %1296 = vmatprep.subr.mxu0 0.0
      %1297 = vmatpush1.msra.mxu0 0.0
      %1298 = vmatprep.subr.mxu0 0.0
      %1299 = vmatpush1.msra.mxu0 0.0
      %1300 = vmatprep.subr.mxu0 0.0
      %1301 = vmatpush1.msra.mxu0 0.0
      %1302 = vmatprep.subr.mxu0 0.0
      %1303 = vmatpush1.msra.mxu0 0.0
      %1304 = vmatprep.subr.mxu0 0.0
      %1305 = vmatpush1.msra.mxu0 0.0
      %1306 = vmatprep.subr.mxu0 0.0
      %1307 = vmatpush1.msra.mxu0 0.0
      %1308 = vmatprep.subr.mxu0 0.0
      %1309 = vmatpush1.msra.mxu0 0.0
      %1310 = vmatprep.subr.mxu0 0.0
      %1311 = vmatpush1.msra.mxu0 0.0
      %1312 = vmatprep.mubr.f32.mxu0 0.0
      %1313 = vmatmul.mubr.f32.gmra.mrb[0].mxu0 %v1240
      %v1314 = vpop.f32.mrb[0].mxu0
      %v1315 = vadd.f32 %v1237, %v1314
      %v1316 = vpop.f32.mrb[0].mxu0
      %v1317 = vadd.f32 %v1237, %v1316
      %1318 = vdwg.mxu0
      %v1319 = vmax.f32 %v1315, 0.0
      %v1320 = vmax.f32 %v1317, 0.0
      %v1321 = vmin.f32 %v1319, 6.0
      %v1322 = vmin.f32 %v1320, 6.0
      %v1325 = vcombine.low %v788, %v789
      %v1327 = vunpack.c.l.s4 1966171168
      %v1328 = vunpack.c.0.s8 %v1327
      %v1329 = vlaneseq
      %v1330 = vshrl.u32 %v1329, 7
      %v1331 = vsub.s32 %v1328, %v1330
      %v1332 = vrot.slane %v1325, %v1331
      %v1333 = vcombine.high %v1332, %v1332
      %v1335 = vunpack.c.l.s4 1966171168
      %v1336 = vunpack.c.0.s8 %v1335
      %v1337 = vlaneseq
      %v1338 = vshrl.u32 %v1337, 7
      %v1339 = vsub.s32 %v1336, %v1338
      %v1340 = vrot.slane %v1332, %v1339
      %v1342 = vunpack.c.l.s4 1966171168
      %v1343 = vunpack.c.0.s8 %v1342
      %v1344 = vlaneseq
      %v1345 = vshrl.u32 %v1344, 7
      %v1346 = vsub.s32 %v1343, %v1345
      %v1347 = vrot.slane %v1333, %v1346
      %v1348 = vcombine.high %v1340, %v1340
      %v1349 = vcombine.high %v1347, %v1347
      %v1354 = vlaneseq
      %vm1355 = vcmp.ge.s32.totalorder %v1354, 0
      %vm1356 = vcmp.lt.s32.totalorder %v1354, 256
      %vm1357 = vmand %vm1355, %vm1356
      %1358 = vst.msk [vmem:[%s467] ss:$2 sm:$0x3] %vm1357, %v1340
      %s1359 = scalar_lea.vmem %s467, 4
      %1360 = vst.msk [vmem:[%s1359] ss:$2 sm:$0x3] %vm1357, %v1347
      %s1361 = scalar_lea.vmem %s467, 8
      %1362 = vst.msk [vmem:[%s1361] ss:$2 sm:$0x3] %vm1357, %v1348
      %s1363 = scalar_lea.vmem %s467, 12
      %1364 = vst.msk [vmem:[%s1363] ss:$2 sm:$0x3] %vm1357, %v1349
      %v1367 = vcombine.low %v1321, %v1322
      %v1369 = vunpack.c.l.s4 1966171168
      %v1370 = vunpack.c.0.s8 %v1369
      %v1371 = vlaneseq
      %v1372 = vshrl.u32 %v1371, 7
      %v1373 = vsub.s32 %v1370, %v1372
      %v1374 = vrot.slane %v1367, %v1373
      %v1375 = vcombine.high %v1374, %v1374
      %v1377 = vunpack.c.l.s4 1966171168
      %v1378 = vunpack.c.0.s8 %v1377
      %v1379 = vlaneseq
      %v1380 = vshrl.u32 %v1379, 7
      %v1381 = vsub.s32 %v1378, %v1380
      %v1382 = vrot.slane %v1374, %v1381
      %v1384 = vunpack.c.l.s4 1966171168
      %v1385 = vunpack.c.0.s8 %v1384
      %v1386 = vlaneseq
      %v1387 = vshrl.u32 %v1386, 7
      %v1388 = vsub.s32 %v1385, %v1387
      %v1389 = vrot.slane %v1375, %v1388
      %v1390 = vcombine.high %v1382, %v1382
      %v1391 = vcombine.high %v1389, %v1389
      %s1396 = scalar_lea.vmem %s467, 1
      %1397 = vst.msk [vmem:[%s1396] ss:$2 sm:$0x3] %vm1357, %v1382
      %s1398 = scalar_lea.vmem %s467, 5
      %1399 = vst.msk [vmem:[%s1398] ss:$2 sm:$0x3] %vm1357, %v1389
      %s1400 = scalar_lea.vmem %s467, 9
      %1401 = vst.msk [vmem:[%s1400] ss:$2 sm:$0x3] %vm1357, %v1390
      %s1402 = scalar_lea.vmem %s467, 13
      %1403 = vst.msk [vmem:[%s1402] ss:$2 sm:$0x3] %vm1357, %v1391
      %p1404 = scmp.lt.s32.totalorder %s25, 1
      %s1405 = scalar_select %p1404, %s25, 1
      %s1406 = smul.addr %s1405, 8
      %s1407 = smul.addr %s1406, 2
      %s1408 = scalar_lea.vmem %s14, %s1407
      // Predicated region
      $region77: #{shuffle_block_x_forward.1} parent=75 // pred_check
        %p1409 = pneg %p342
      $region78: #{shuffle_block_x_forward.1} parent=75 // pred_check_branch
        %1411 = sbr.rel (%p1409) target = $region80
      $region79: #{shuffle_block_x_forward.1} parent=75 // pred_region
        _
      $region80: #{shuffle_block_x_forward.1} parent=75 // pred_fallthru
        _
    $region76: #{shuffle_block_x_forward.1} parent=5 // pred_fallthru
      _
    %p1412 = scmp.le.s32.totalorder 2, %s20
    // Predicated region
    $region81: #{shuffle_block_x_forward.1} parent=5 // pred_check
      %p1413 = pneg %p1412
    $region82: #{shuffle_block_x_forward.1} parent=5 // pred_check_branch
      %1415 = sbr.rel (%p1413) target = $region84
    $region83: #{shuffle_block_x_forward.1} parent=5 // pred_region
      %s1416 = ssub.s32 %s20, 2
      // Predicated region
      $region85: #{shuffle_block_x_forward.1} parent=83 // pred_check
        %p1417 = pneg %p348
      $region86: #{shuffle_block_x_forward.1} parent=83 // pred_check_branch
        %1419 = sbr.rel (%p1417) target = $region88
      $region87: #{shuffle_block_x_forward.1} parent=83 // pred_region
        %p1420 = scmp.lt.s32.totalorder %s26, 1
        %s1421 = scalar_select %p1420, %s26, 1
        %s1422 = smul.addr %s1421, 8
        %s1423 = smul.addr %s1422, 2
        %s1424 = scalar_lea.vmem %s14, %s1423
      $region88: #{shuffle_block_x_forward.1} parent=83 // pred_fallthru
        _
    $region84: #{shuffle_block_x_forward.1} parent=5 // pred_fallthru
      _
  $region6: #{shuffle_block_x_forward.1} parent=0 // loop_footer
    %s24 = sadd.s32 1, %s20
  $region7: #{shuffle_block_x_forward.1} parent=0 // loop_footer_branch
    %19 = sbr.rel target = $region3
  $region8: #{shuffle_block_x_forward.1} parent=0 // loop_exit
    _

</llo_original>
